<compile_context>
chip_gen: v6e
topology: v6e:2x2x1
jax: 0.10.0
libtpu: 0.0.40
codegen_flags: <defaults>
</compile_context>

<pallas_src>
import math
import numpy as np
import jax
import jax.numpy as jnp
from jax.experimental import pallas as pl
from jax.experimental.pallas import tpu as pltpu

F32 = jnp.float32
VMEM_LIMIT = 48 * 1024 * 1024   # <= v7x 64 MiB per-TC VMEM; safe on all generations


def _pool_select_mats(H, W, Wp):
    """0/1 matrices S[t]:(H*Wp, Ho*Wo) that gather the 4 taps of a 2x2 stride-2 maxpool
    from the flat padded-width conv-output layout (row-major over (H, Wp))."""
    Ho, Wo = H // 2, W // 2
    S = np.zeros((4, H * Wp, Ho * Wo), dtype=np.float32)
    for t, (dy, dx) in enumerate(((0, 0), (0, 1), (1, 0), (1, 1))):
        for i in range(Ho):
            for j in range(Wo):
                S[t, (2 * i + dy) * Wp + (2 * j + dx), i * Wo + j] = 1.0
    return jnp.asarray(S)


def encoder_forward(params, x):
    """x: (N, Cin, H, W) float32 NCHW (torch layout). Returns (pooled, xb) like torch."""
    w, b = params["e11_w"], params["e11_b"]                 # (Cout,Cin,K,K), (Cout,)
    N, Cin, H, W = x.shape
    Cout, _, K, _ = w.shape
    assert K % 2 == 1 and H % 2 == 0 and W % 2 == 0
    pad = (K - 1) // 2
    Wp = W + 2 * pad
    Hp = H + 2 * pad + 1          # one extra zero row: flat shifted windows stay in range
    L_in = Hp * Wp
    L = H * Wp                    # conv output length (padded-width flat layout)
    Ho, Wo = H // 2, W // 2
    Po = Ho * Wo
    KKC = K * K * Cin

    # TODO(synk): nn.Dropout(0.5) is modeled as identity (eval-mode forward); train-mode
    # random masking + 1/(1-p) scaling is not implemented.

    # Host-side layout prep (cheap / free reshapes only).
    xp = jnp.pad(x.astype(F32), ((0, 0), (0, 0), (pad, pad + 1), (pad, pad)))
    xflat = xp.reshape(N, Cin, L_in)                                      # bitcast reshape
    w2 = jnp.transpose(w.astype(F32), (0, 2, 3, 1)).reshape(Cout, KKC)    # (Cout, K*K*Cin)
    b2 = b.astype(F32).reshape(Cout, 1)
    S = _pool_select_mats(H, W, Wp)                                       # (4, L, Po)

    taps = [(dy, dx) for dy in range(K) for dx in range(K)]

    def kernel(x_ref, w_ref, b_ref, s_ref, xb_ref, pool_ref, slab_ref):
        # im2col slab (K*K*Cin, L): every tap is a contiguous shifted window of the flat
        # padded image -> lane-dense loads, no per-tap reshapes / relayouts.
        for t, (dy, dx) in enumerate(taps):
            sh = dy * Wp + dx                                    # static shift
            slab_ref[pl.ds(t * Cin, Cin), :] = x_ref[0, :, pl.ds(sh, L)]
        # Single MXU matmul: (Cout, K*K*Cin) @ (K*K*Cin, L) -> lane-dense (Cout, L).
        acc = jnp.dot(w_ref[...], slab_ref[...], preferred_element_type=F32)
        xb = jnp.tanh(acc + b_ref[...])                          # bias bcast over lanes
        xb_ref[0] = xb
        # MaxPool2d(2,2): gather each of the 4 window taps with a 0/1 selection matmul
        # (MXU), then elementwise max on the VPU. Padded-width garbage columns are never
        # selected by S, so they cannot leak into the pooled output.
        p00 = jnp.dot(xb, s_ref[0], preferred_element_type=F32)
        p01 = jnp.dot(xb, s_ref[1], preferred_element_type=F32)
        p10 = jnp.dot(xb, s_ref[2], preferred_element_type=F32)
        p11 = jnp.dot(xb, s_ref[3], preferred_element_type=F32)
        pool_ref[0] = jnp.maximum(jnp.maximum(p00, p01), jnp.maximum(p10, p11))

    xb_flat, pool_flat = pl.pallas_call(
        kernel,
        out_shape=(jax.ShapeDtypeStruct((N, Cout, L), F32),
                   jax.ShapeDtypeStruct((N, Cout, Po), F32)),
        grid=(N,),
        in_specs=[
            pl.BlockSpec((1, Cin, L_in), lambda n: (n, 0, 0)),
            pl.BlockSpec((Cout, KKC), lambda n: (0, 0)),
            pl.BlockSpec((Cout, 1), lambda n: (0, 0)),
            pl.BlockSpec((4, L, Po), lambda n: (0, 0, 0)),
        ],
        out_specs=(pl.BlockSpec((1, Cout, L), lambda n: (n, 0, 0)),
                   pl.BlockSpec((1, Cout, Po), lambda n: (n, 0, 0))),
        scratch_shapes=[pltpu.VMEM((KKC, L), F32)],
        compiler_params=pltpu.CompilerParams(
            dimension_semantics=("parallel",),        # v7x: shard batch across 2 TCs
            vmem_limit_bytes=VMEM_LIMIT),
    )(xflat, w2, b2, S)

    # Strip padded-width columns (small XLA data-movement glue only).
    xb = xb_flat.reshape(N, Cout, H, Wp)[:, :, :, :W]
    pooled = pool_flat.reshape(N, Cout, Ho, Wo)
    return pooled, xb


def init_params(key, ch1, ch2, k=3):
    """Torch-default-like uniform init, deterministic."""
    kw, kb = jax.random.split(key)
    bound = 1.0 / math.sqrt(ch1 * k * k)
    return {
        "e11_w": jax.random.uniform(kw, (ch2, ch1, k, k), F32, -bound, bound),
        "e11_b": jax.random.uniform(kb, (ch2,), F32, -bound, bound),
    }


def _reference(params, x):
    """Pure-JAX/XLA reference for correctness checking."""
    w, b = params["e11_w"], params["e11_b"]
    xb = jax.lax.conv_general_dilated(
        x, w, window_strides=(1, 1), padding="SAME",
        dimension_numbers=("NCHW", "OIHW", "NCHW"),
        precision=jax.lax.Precision.HIGHEST)
    xb = jnp.tanh(xb + b.reshape(1, -1, 1, 1))
    N, C, H, W = xb.shape
    pooled = jnp.max(xb.reshape(N, C, H // 2, 2, W // 2, 2), axis=(3, 5))
    return pooled, xb


if __name__ == "__main__":
    key = jax.random.PRNGKey(0)
    kp, kx = jax.random.split(key)
    ch1, ch2, k = 4, 8, 3
    N, H, W = 2, 16, 16

    params = init_params(kp, ch1, ch2, k)
    x = jax.random.normal(kx, (N, ch1, H, W), F32)

    fwd = jax.jit(encoder_forward)
    pooled, xb = jax.block_until_ready(fwd(params, x))

    assert pooled.shape == (N, ch2, H // 2, W // 2) and pooled.dtype == jnp.float32
    assert xb.shape == (N, ch2, H, W) and xb.dtype == jnp.float32

    ref_pooled, ref_xb = _reference(params, x)
    assert jnp.allclose(xb, ref_xb, atol=5e-2, rtol=5e-2)
    assert jnp.allclose(pooled, ref_pooled, atol=5e-2, rtol=5e-2)

    print("KERNEL_OK")
</pallas_src>

<mosaic_0001>
module attributes {stable_mosaic.version = 11 : i64} {
  func.func @kernel(%arg0: i32, %arg1: memref<1x4x342xf32, #tpu.memory_space<vmem>>, %arg2: memref<8x36xf32, #tpu.memory_space<vmem>>, %arg3: memref<8x1xf32, #tpu.memory_space<vmem>>, %arg4: memref<4x288x64xf32, #tpu.memory_space<vmem>>, %arg5: memref<1x8x288xf32, #tpu.memory_space<vmem>>, %arg6: memref<1x8x64xf32, #tpu.memory_space<vmem>>, %arg7: memref<36x288xf32, #tpu.memory_space<vmem>>) attributes {dimension_semantics = [#tpu.dimension_semantics<parallel>], iteration_bounds = array<i64: 2>, scalar_prefetch = 0 : i64, scratch_operands = 1 : i64, tpu.core_type = #tpu.core_type<tc>, window_params = [{transform_indices = @transform_0, window_bounds = array<i64: 1, 4, 342>}, {pipeline_mode = #tpu.pipeline_mode<synchronous>, transform_indices = @transform_1, window_bounds = array<i64: 8, 36>}, {pipeline_mode = #tpu.pipeline_mode<synchronous>, transform_indices = @transform_2, window_bounds = array<i64: 8, 1>}, {pipeline_mode = #tpu.pipeline_mode<synchronous>, transform_indices = @transform_3, window_bounds = array<i64: 4, 288, 64>}, {transform_indices = @transform_4, window_bounds = array<i64: 1, 8, 288>}, {transform_indices = @transform_5, window_bounds = array<i64: 1, 8, 64>}]} {
    %c0 = arith.constant 0 : index
    %c0_0 = arith.constant 0 : index
    %c0_1 = arith.constant 0 : index
    %0 = vector.load %arg1[%c0, %c0_0, %c0_1] : memref<1x4x342xf32, #tpu.memory_space<vmem>>, vector<1x4x288xf32>
    %1 = vector.shape_cast %0 : vector<1x4x288xf32> to vector<4x288xf32>
    %c0_2 = arith.constant 0 : index
    %c0_3 = arith.constant 0 : index
    %2 = vector.load %arg7[%c0_2, %c0_3] : memref<36x288xf32, #tpu.memory_space<vmem>>, vector<4x288xf32>
    tpu.vector_store %arg7[%c0_2, %c0_3], %1 {strides = array<i32>} : memref<36x288xf32, #tpu.memory_space<vmem>>, vector<4x288xf32>,
    %c0_4 = arith.constant 0 : index
    %c0_5 = arith.constant 0 : index
    %c1 = arith.constant 1 : index
    %3 = vector.load %arg1[%c0_4, %c0_5, %c1] : memref<1x4x342xf32, #tpu.memory_space<vmem>>, vector<1x4x288xf32>
    %4 = vector.shape_cast %3 : vector<1x4x288xf32> to vector<4x288xf32>
    %c4 = arith.constant 4 : index
    %c0_6 = arith.constant 0 : index
    %5 = vector.load %arg7[%c4, %c0_6] : memref<36x288xf32, #tpu.memory_space<vmem>>, vector<4x288xf32>
    tpu.vector_store %arg7[%c4, %c0_6], %4 {strides = array<i32>} : memref<36x288xf32, #tpu.memory_space<vmem>>, vector<4x288xf32>,
    %c0_7 = arith.constant 0 : index
    %c0_8 = arith.constant 0 : index
    %c2 = arith.constant 2 : index
    %6 = vector.load %arg1[%c0_7, %c0_8, %c2] : memref<1x4x342xf32, #tpu.memory_space<vmem>>, vector<1x4x288xf32>
    %7 = vector.shape_cast %6 : vector<1x4x288xf32> to vector<4x288xf32>
    %c8 = arith.constant 8 : index
    %c0_9 = arith.constant 0 : index
    %8 = vector.load %arg7[%c8, %c0_9] : memref<36x288xf32, #tpu.memory_space<vmem>>, vector<4x288xf32>
    tpu.vector_store %arg7[%c8, %c0_9], %7 {strides = array<i32>} : memref<36x288xf32, #tpu.memory_space<vmem>>, vector<4x288xf32>,
    %c0_10 = arith.constant 0 : index
    %c0_11 = arith.constant 0 : index
    %c18 = arith.constant 18 : index
    %9 = vector.load %arg1[%c0_10, %c0_11, %c18] : memref<1x4x342xf32, #tpu.memory_space<vmem>>, vector<1x4x288xf32>
    %10 = vector.shape_cast %9 : vector<1x4x288xf32> to vector<4x288xf32>
    %c12 = arith.constant 12 : index
    %c0_12 = arith.constant 0 : index
    %11 = vector.load %arg7[%c12, %c0_12] : memref<36x288xf32, #tpu.memory_space<vmem>>, vector<4x288xf32>
    tpu.vector_store %arg7[%c12, %c0_12], %10 {strides = array<i32>} : memref<36x288xf32, #tpu.memory_space<vmem>>, vector<4x288xf32>,
    %c0_13 = arith.constant 0 : index
    %c0_14 = arith.constant 0 : index
    %c19 = arith.constant 19 : index
    %12 = vector.load %arg1[%c0_13, %c0_14, %c19] : memref<1x4x342xf32, #tpu.memory_space<vmem>>, vector<1x4x288xf32>
    %13 = vector.shape_cast %12 : vector<1x4x288xf32> to vector<4x288xf32>
    %c16 = arith.constant 16 : index
    %c0_15 = arith.constant 0 : index
    %14 = vector.load %arg7[%c16, %c0_15] : memref<36x288xf32, #tpu.memory_space<vmem>>, vector<4x288xf32>
    tpu.vector_store %arg7[%c16, %c0_15], %13 {strides = array<i32>} : memref<36x288xf32, #tpu.memory_space<vmem>>, vector<4x288xf32>,
    %c0_16 = arith.constant 0 : index
    %c0_17 = arith.constant 0 : index
    %c20 = arith.constant 20 : index
    %15 = vector.load %arg1[%c0_16, %c0_17, %c20] : memref<1x4x342xf32, #tpu.memory_space<vmem>>, vector<1x4x288xf32>
    %16 = vector.shape_cast %15 : vector<1x4x288xf32> to vector<4x288xf32>
    %c20_18 = arith.constant 20 : index
    %c0_19 = arith.constant 0 : index
    %17 = vector.load %arg7[%c20_18, %c0_19] : memref<36x288xf32, #tpu.memory_space<vmem>>, vector<4x288xf32>
    tpu.vector_store %arg7[%c20_18, %c0_19], %16 {strides = array<i32>} : memref<36x288xf32, #tpu.memory_space<vmem>>, vector<4x288xf32>,
    %c0_20 = arith.constant 0 : index
    %c0_21 = arith.constant 0 : index
    %c36 = arith.constant 36 : index
    %18 = vector.load %arg1[%c0_20, %c0_21, %c36] : memref<1x4x342xf32, #tpu.memory_space<vmem>>, vector<1x4x288xf32>
    %19 = vector.shape_cast %18 : vector<1x4x288xf32> to vector<4x288xf32>
    %c24 = arith.constant 24 : index
    %c0_22 = arith.constant 0 : index
    %20 = vector.load %arg7[%c24, %c0_22] : memref<36x288xf32, #tpu.memory_space<vmem>>, vector<4x288xf32>
    tpu.vector_store %arg7[%c24, %c0_22], %19 {strides = array<i32>} : memref<36x288xf32, #tpu.memory_space<vmem>>, vector<4x288xf32>,
    %c0_23 = arith.constant 0 : index
    %c0_24 = arith.constant 0 : index
    %c37 = arith.constant 37 : index
    %21 = vector.load %arg1[%c0_23, %c0_24, %c37] : memref<1x4x342xf32, #tpu.memory_space<vmem>>, vector<1x4x288xf32>
    %22 = vector.shape_cast %21 : vector<1x4x288xf32> to vector<4x288xf32>
    %c28 = arith.constant 28 : index
    %c0_25 = arith.constant 0 : index
    %23 = vector.load %arg7[%c28, %c0_25] : memref<36x288xf32, #tpu.memory_space<vmem>>, vector<4x288xf32>
    tpu.vector_store %arg7[%c28, %c0_25], %22 {strides = array<i32>} : memref<36x288xf32, #tpu.memory_space<vmem>>, vector<4x288xf32>,
    %c0_26 = arith.constant 0 : index
    %c0_27 = arith.constant 0 : index
    %c38 = arith.constant 38 : index
    %24 = vector.load %arg1[%c0_26, %c0_27, %c38] : memref<1x4x342xf32, #tpu.memory_space<vmem>>, vector<1x4x288xf32>
    %25 = vector.shape_cast %24 : vector<1x4x288xf32> to vector<4x288xf32>
    %c32 = arith.constant 32 : index
    %c0_28 = arith.constant 0 : index
    %26 = vector.load %arg7[%c32, %c0_28] : memref<36x288xf32, #tpu.memory_space<vmem>>, vector<4x288xf32>
    tpu.vector_store %arg7[%c32, %c0_28], %25 {strides = array<i32>} : memref<36x288xf32, #tpu.memory_space<vmem>>, vector<4x288xf32>,
    %c0_29 = arith.constant 0 : index
    %c0_30 = arith.constant 0 : index
    %27 = vector.load %arg2[%c0_29, %c0_30] : memref<8x36xf32, #tpu.memory_space<vmem>>, vector<8x36xf32>
    %c0_31 = arith.constant 0 : index
    %c0_32 = arith.constant 0 : index
    %28 = vector.load %arg7[%c0_31, %c0_32] : memref<36x288xf32, #tpu.memory_space<vmem>>, vector<36x288xf32>
    %cst = arith.constant dense<0.000000e+00> : vector<8x288xf32>
    %29 = tpu.matmul %27, %28, %cst {dimension_numbers = #tpu.dot_dimension_numbers<[1], [0], [0], [1], [0, 0, 1, 1], [], []>} : vector<8x36xf32>, vector<36x288xf32>, vector<8x288xf32> -> vector<8x288xf32>
    %c0_33 = arith.constant 0 : index
    %c0_34 = arith.constant 0 : index
    %30 = vector.load %arg3[%c0_33, %c0_34] : memref<8x1xf32, #tpu.memory_space<vmem>>, vector<8x1xf32>
    %31 = vector.broadcast %30 : vector<8x1xf32> to vector<8x288xf32>
    %32 = arith.addf %29, %31 : vector<8x288xf32>
    %33 = math.tanh %32 : vector<8x288xf32>
    %c0_35 = arith.constant 0 : index
    %c0_36 = arith.constant 0 : index
    %c0_37 = arith.constant 0 : index
    %34 = vector.load %arg5[%c0_35, %c0_36, %c0_37] : memref<1x8x288xf32, #tpu.memory_space<vmem>>, vector<1x8x288xf32>
    %35 = vector.shape_cast %34 : vector<1x8x288xf32> to vector<8x288xf32>
    %36 = vector.shape_cast %33 : vector<8x288xf32> to vector<1x8x288xf32>
    tpu.vector_store %arg5[%c0_35, %c0_36, %c0_37], %36 {strides = array<i32>} : memref<1x8x288xf32, #tpu.memory_space<vmem>>, vector<1x8x288xf32>,
    %c0_38 = arith.constant 0 : index
    %c0_39 = arith.constant 0 : index
    %c0_40 = arith.constant 0 : index
    %37 = vector.load %arg4[%c0_38, %c0_39, %c0_40] : memref<4x288x64xf32, #tpu.memory_space<vmem>>, vector<1x288x64xf32>
    %38 = vector.shape_cast %37 : vector<1x288x64xf32> to vector<288x64xf32>
    %cst_41 = arith.constant dense<0.000000e+00> : vector<8x64xf32>
    %39 = tpu.matmul %33, %38, %cst_41 {dimension_numbers = #tpu.dot_dimension_numbers<[1], [0], [0], [1], [0, 0, 1, 1], [], []>} : vector<8x288xf32>, vector<288x64xf32>, vector<8x64xf32> -> vector<8x64xf32>
    %c1_42 = arith.constant 1 : index
    %c0_43 = arith.constant 0 : index
    %c0_44 = arith.constant 0 : index
    %40 = vector.load %arg4[%c1_42, %c0_43, %c0_44] : memref<4x288x64xf32, #tpu.memory_space<vmem>>, vector<1x288x64xf32>
    %41 = vector.shape_cast %40 : vector<1x288x64xf32> to vector<288x64xf32>
    %cst_45 = arith.constant dense<0.000000e+00> : vector<8x64xf32>
    %42 = tpu.matmul %33, %41, %cst_45 {dimension_numbers = #tpu.dot_dimension_numbers<[1], [0], [0], [1], [0, 0, 1, 1], [], []>} : vector<8x288xf32>, vector<288x64xf32>, vector<8x64xf32> -> vector<8x64xf32>
    %c2_46 = arith.constant 2 : index
    %c0_47 = arith.constant 0 : index
    %c0_48 = arith.constant 0 : index
    %43 = vector.load %arg4[%c2_46, %c0_47, %c0_48] : memref<4x288x64xf32, #tpu.memory_space<vmem>>, vector<1x288x64xf32>
    %44 = vector.shape_cast %43 : vector<1x288x64xf32> to vector<288x64xf32>
    %cst_49 = arith.constant dense<0.000000e+00> : vector<8x64xf32>
    %45 = tpu.matmul %33, %44, %cst_49 {dimension_numbers = #tpu.dot_dimension_numbers<[1], [0], [0], [1], [0, 0, 1, 1], [], []>} : vector<8x288xf32>, vector<288x64xf32>, vector<8x64xf32> -> vector<8x64xf32>
    %c3 = arith.constant 3 : index
    %c0_50 = arith.constant 0 : index
    %c0_51 = arith.constant 0 : index
    %46 = vector.load %arg4[%c3, %c0_50, %c0_51] : memref<4x288x64xf32, #tpu.memory_space<vmem>>, vector<1x288x64xf32>
    %47 = vector.shape_cast %46 : vector<1x288x64xf32> to vector<288x64xf32>
    %cst_52 = arith.constant dense<0.000000e+00> : vector<8x64xf32>
    %48 = tpu.matmul %33, %47, %cst_52 {dimension_numbers = #tpu.dot_dimension_numbers<[1], [0], [0], [1], [0, 0, 1, 1], [], []>} : vector<8x288xf32>, vector<288x64xf32>, vector<8x64xf32> -> vector<8x64xf32>
    %49 = arith.maximumf %39, %42 : vector<8x64xf32>
    %50 = arith.maximumf %45, %48 : vector<8x64xf32>
    %51 = arith.maximumf %49, %50 : vector<8x64xf32>
    %c0_53 = arith.constant 0 : index
    %c0_54 = arith.constant 0 : index
    %c0_55 = arith.constant 0 : index
    %52 = vector.load %arg6[%c0_53, %c0_54, %c0_55] : memref<1x8x64xf32, #tpu.memory_space<vmem>>, vector<1x8x64xf32>
    %53 = vector.shape_cast %52 : vector<1x8x64xf32> to vector<8x64xf32>
    %54 = vector.shape_cast %51 : vector<8x64xf32> to vector<1x8x64xf32>
    tpu.vector_store %arg6[%c0_53, %c0_54, %c0_55], %54 {strides = array<i32>} : memref<1x8x64xf32, #tpu.memory_space<vmem>>, vector<1x8x64xf32>,
    return
  }
  func.func @transform_0(%arg0: i32) -> (i32, i32, i32) {
    %c0_i32 = arith.constant 0 : i32
    %c0_i32_0 = arith.constant 0 : i32
    %c0_i32_1 = arith.constant 0 : i32
    return %arg0, %c0_i32, %c0_i32_0 : i32, i32, i32
  }
  func.func @transform_1(%arg0: i32) -> (i32, i32) {
    %c0_i32 = arith.constant 0 : i32
    %c0_i32_0 = arith.constant 0 : i32
    %c0_i32_1 = arith.constant 0 : i32
    return %c0_i32, %c0_i32_0 : i32, i32
  }
  func.func @transform_2(%arg0: i32) -> (i32, i32) {
    %c0_i32 = arith.constant 0 : i32
    %c0_i32_0 = arith.constant 0 : i32
    %c0_i32_1 = arith.constant 0 : i32
    return %c0_i32, %c0_i32_0 : i32, i32
  }
  func.func @transform_3(%arg0: i32) -> (i32, i32, i32) {
    %c0_i32 = arith.constant 0 : i32
    %c0_i32_0 = arith.constant 0 : i32
    %c0_i32_1 = arith.constant 0 : i32
    %c0_i32_2 = arith.constant 0 : i32
    return %c0_i32, %c0_i32_0, %c0_i32_1 : i32, i32, i32
  }
  func.func @transform_4(%arg0: i32) -> (i32, i32, i32) {
    %c0_i32 = arith.constant 0 : i32
    %c0_i32_0 = arith.constant 0 : i32
    %c0_i32_1 = arith.constant 0 : i32
    return %arg0, %c0_i32, %c0_i32_0 : i32, i32, i32
  }
  func.func @transform_5(%arg0: i32) -> (i32, i32, i32) {
    %c0_i32 = arith.constant 0 : i32
    %c0_i32_0 = arith.constant 0 : i32
    %c0_i32_1 = arith.constant 0 : i32
    return %arg0, %c0_i32, %c0_i32_0 : i32, i32, i32
  }
}

</mosaic_0001>

<llo_original>
// kernel: encoder_forward.1
$region0: #{encoder_forward.1}
  #allocation0 [shape = 'u32[]', space=smem, size = 0x4, offset = 0x4, fixed_abs, tag = 'smem constant byte address 0x4 - core index']
  #allocation1 [shape = 'u32[144,128]{1,0:T(1,128)}', space=vmem, size = 0x12000, scoped, tag = 'internal scratch']
  #allocation2 [shape = 'f32[36,288]{1,0:T(8,128)}', space=vmem, size = 0xf000, scoped, tag = 'scratch operand']
  %s0 = inlined_call_operand.vmem [shape: f32[2,4,342], index: 0, kind: input, shape index: {}]
  %s1 = inlined_call_operand.vmem [shape: f32[8,36], index: 1, kind: input, shape index: {}]
  %s2 = inlined_call_operand.vmem [shape: f32[8,1], index: 2, kind: input, shape index: {}]
  %s3 = inlined_call_operand.hbm [shape: f32[4,288,64], index: 3, kind: input, shape index: {}]
  %s4 = inlined_call_operand.vmem [shape: f32[2,8,288], index: 4, kind: output, shape index: {0}]
  %s5 = inlined_call_operand.vmem [shape: f32[2,8,64], index: 5, kind: output, shape index: {1}]
  %6 = xla_tuple %s4, %s5
  %s7 = sld [smem:[#allocation0]]
  $region61: #{encoder_forward.1} parent=0
    _
  %s9 = ssub.s32 1, %s7
  %s10 = scalar_select 0, %s9, %s7
  $region1: #{encoder_forward.1} parent=0
    #allocation3 [shape = 'u8[589824]{0}', space=vmem, size = 0x90000, scoped, tag = 'input window, operand 3, single buffered']
    #allocation4 [shape = 's32[2]{0}', space=sflag, size = 0x8, scoped, tag = 'scoped memory for encoder_forward.1']
    %11 = vsyncpa [#allocation4], 0
    loop: start=0, step=1, limit=4
    $region2: #{encoder_forward.1} parent=1 // loop_pre_header
      _
    $region3: #{encoder_forward.1} parent=1 // loop_header
      %s13 = sphi 0, %s17
      %p14 = scmp.ge.s32.totalorder %s13, 4
      %s23 = sphi 0, %s25
      %s26 = sphi 0, %s23
      %s27 = sphi 0, %s26
      %s43 = sphi 0, %s27
      %s47 = sphi 0, %s47
      %s49 = sphi 0, %s47
      %s50 = sphi 0, %s49
      %s64 = sphi 0, %s50
      %s68 = sphi 0, %s68
      %s70 = sphi 0, %s68
      %s71 = sphi 0, %s70
      %s85 = sphi 0, %s71
      %s89 = sphi 0, %s89
      %s91 = sphi 0, %s89
      %s92 = sphi 0, %s91
      %s106 = sphi 0, %s92
      %s112 = sphi 0, %s114
      %s115 = sphi 0, %s112
      %s116 = sphi 0, %s115
      %s132 = sphi 0, %s116
      %s138 = sphi 0, %s140
      %s141 = sphi 0, %s138
      %s142 = sphi 0, %s141
      %s158 = sphi 0, %s142
    $region4: #{encoder_forward.1} parent=1 // loop_header_branch
      %16 = sbr.rel (%p14) target = $region8
    $region5: #{encoder_forward.1} parent=1 // loop_body
      %s18 = ssub.s32 %s13, 1
      %s19 = ssub.s32 %s13, 2
      %s20 = sadd.s32 %s13, 1
      %s21 = ssub.s32 %s13, %s20
      %p22 = scmp.eq.s32.totalorder %s21, 0
      %s24 = sadd.s32 %s23, 1
      %s25 = scalar_select %p22, %s23, %s24
      %p28 = pneg %p22
      %p29 = scmp.eq.s32.totalorder %s13, 1
      %p30 = por %p28, %p29
      %p31 = scmp.ne.s32.totalorder %s23, %s26
      %p32 = scmp.eq.s32.totalorder %s13, 0
      %p33 = por %p31, %p32
      %p34 = scmp.ne.s32.totalorder %s23, %s26
      %p35 = scmp.eq.s32.totalorder %s18, 1
      %p36 = por %p34, %p35
      %p37 = scmp.ne.s32.totalorder %s26, %s27
      %p38 = scmp.eq.s32.totalorder %s18, 0
      %p39 = por %p37, %p38
      %p40 = scmp.ne.s32.totalorder %s26, %s27
      %p41 = scmp.eq.s32.totalorder %s19, 1
      %p42 = por %p40, %p41
      %p44 = scmp.ne.s32.totalorder %s27, %s43
      %p45 = scmp.eq.s32.totalorder %s19, 0
      %p46 = por %p44, %p45
      %s48 = sadd.s32 %s47, 1
      %p51 = scmp.eq.s32.totalorder %s13, 1
      %p52 = scmp.ne.s32.totalorder %s47, %s49
      %p53 = scmp.eq.s32.totalorder %s13, 0
      %p54 = por %p52, %p53
      %p55 = scmp.ne.s32.totalorder %s47, %s49
      %p56 = scmp.eq.s32.totalorder %s18, 1
      %p57 = por %p55, %p56
      %p58 = scmp.ne.s32.totalorder %s49, %s50
      %p59 = scmp.eq.s32.totalorder %s18, 0
      %p60 = por %p58, %p59
      %p61 = scmp.ne.s32.totalorder %s49, %s50
      %p62 = scmp.eq.s32.totalorder %s19, 1
      %p63 = por %p61, %p62
      %p65 = scmp.ne.s32.totalorder %s50, %s64
      %p66 = scmp.eq.s32.totalorder %s19, 0
      %p67 = por %p65, %p66
      %s69 = sadd.s32 %s68, 1
      %p72 = scmp.eq.s32.totalorder %s13, 1
      %p73 = scmp.ne.s32.totalorder %s68, %s70
      %p74 = scmp.eq.s32.totalorder %s13, 0
      %p75 = por %p73, %p74
      %p76 = scmp.ne.s32.totalorder %s68, %s70
      %p77 = scmp.eq.s32.totalorder %s18, 1
      %p78 = por %p76, %p77
      %p79 = scmp.ne.s32.totalorder %s70, %s71
      %p80 = scmp.eq.s32.totalorder %s18, 0
      %p81 = por %p79, %p80
      %p82 = scmp.ne.s32.totalorder %s70, %s71
      %p83 = scmp.eq.s32.totalorder %s19, 1
      %p84 = por %p82, %p83
      %p86 = scmp.ne.s32.totalorder %s71, %s85
      %p87 = scmp.eq.s32.totalorder %s19, 0
      %p88 = por %p86, %p87
      %s90 = sadd.s32 %s89, 1
      %p93 = scmp.eq.s32.totalorder %s13, 1
      %p94 = scmp.ne.s32.totalorder %s89, %s91
      %p95 = scmp.eq.s32.totalorder %s13, 0
      %p96 = por %p94, %p95
      %p97 = scmp.ne.s32.totalorder %s89, %s91
      %p98 = scmp.eq.s32.totalorder %s18, 1
      %p99 = por %p97, %p98
      %p100 = scmp.ne.s32.totalorder %s91, %s92
      %p101 = scmp.eq.s32.totalorder %s18, 0
      %p102 = por %p100, %p101
      %p103 = scmp.ne.s32.totalorder %s91, %s92
      %p104 = scmp.eq.s32.totalorder %s19, 1
      %p105 = por %p103, %p104
      %p107 = scmp.ne.s32.totalorder %s92, %s106
      %p108 = scmp.eq.s32.totalorder %s19, 0
      %p109 = por %p107, %p108
      %s110 = ssub.s32 %s13, %s20
      %p111 = scmp.eq.s32.totalorder %s110, 0
      %s113 = sadd.s32 %s112, 1
      %s114 = scalar_select %p111, %s112, %s113
      %p117 = pneg %p111
      %p118 = scmp.eq.s32.totalorder %s13, 1
      %p119 = por %p117, %p118
      %p120 = scmp.ne.s32.totalorder %s112, %s115
      %p121 = scmp.eq.s32.totalorder %s13, 0
      %p122 = por %p120, %p121
      %p123 = scmp.ne.s32.totalorder %s112, %s115
      %p124 = scmp.eq.s32.totalorder %s18, 1
      %p125 = por %p123, %p124
      %p126 = scmp.ne.s32.totalorder %s115, %s116
      %p127 = scmp.eq.s32.totalorder %s18, 0
      %p128 = por %p126, %p127
      %p129 = scmp.ne.s32.totalorder %s115, %s116
      %p130 = scmp.eq.s32.totalorder %s19, 1
      %p131 = por %p129, %p130
      %p133 = scmp.ne.s32.totalorder %s116, %s132
      %p134 = scmp.eq.s32.totalorder %s19, 0
      %p135 = por %p133, %p134
      %s136 = ssub.s32 %s13, %s20
      %p137 = scmp.eq.s32.totalorder %s136, 0
      %s139 = sadd.s32 %s138, 1
      %s140 = scalar_select %p137, %s138, %s139
      %p143 = pneg %p137
      %p144 = scmp.eq.s32.totalorder %s13, 1
      %p145 = por %p143, %p144
      %p146 = scmp.ne.s32.totalorder %s138, %s141
      %p147 = scmp.eq.s32.totalorder %s13, 0
      %p148 = por %p146, %p147
      %p149 = scmp.ne.s32.totalorder %s138, %s141
      %p150 = scmp.eq.s32.totalorder %s18, 1
      %p151 = por %p149, %p150
      %p152 = scmp.ne.s32.totalorder %s141, %s142
      %p153 = scmp.eq.s32.totalorder %s18, 0
      %p154 = por %p152, %p153
      %p155 = scmp.ne.s32.totalorder %s141, %s142
      %p156 = scmp.eq.s32.totalorder %s19, 1
      %p157 = por %p155, %p156
      %p159 = scmp.ne.s32.totalorder %s142, %s158
      %p160 = scmp.eq.s32.totalorder %s19, 0
      %p161 = por %p159, %p160
      %p162 = scmp.le.s32.totalorder 1, %s13
      %p163 = scmp.lt.s32.totalorder %s13, 3
      %p164 = pnand %p162, %p163
      %p165 = pneg %p164
      // Predicated region
      $region9: #{encoder_forward.1} parent=5 // pred_check
        _
      $region10: #{encoder_forward.1} parent=5 // pred_check_branch
        %167 = sbr.rel (%p164) target = $region12
      $region11: #{encoder_forward.1} parent=5 // pred_region
        %s168 = ssub.s32 %s13, 1
        // Predicated region
        $region13: #{encoder_forward.1} parent=11 // pred_check
          %p169 = pneg %p60
        $region14: #{encoder_forward.1} parent=11 // pred_check_branch
          %171 = sbr.rel (%p169) target = $region16
        $region15: #{encoder_forward.1} parent=11 // pred_region
          _
        $region16: #{encoder_forward.1} parent=11 // pred_fallthru
          _
        // Predicated region
        $region17: #{encoder_forward.1} parent=11 // pred_check
          %p172 = pneg %p81
        $region18: #{encoder_forward.1} parent=11 // pred_check_branch
          %174 = sbr.rel (%p172) target = $region20
        $region19: #{encoder_forward.1} parent=11 // pred_region
          _
        $region20: #{encoder_forward.1} parent=11 // pred_fallthru
          _
        // Predicated region
        $region21: #{encoder_forward.1} parent=11 // pred_check
          %p175 = pneg %p102
        $region22: #{encoder_forward.1} parent=11 // pred_check_branch
          %177 = sbr.rel (%p175) target = $region24
        $region23: #{encoder_forward.1} parent=11 // pred_region
          %s179 = ssub.s32 18432, 18432
          %180 = vsyncadd [#allocation4], %s179
          %s181 = sshll.u32 [#allocation3], 4
          %s182 = int_to_ptr.vmem [resolvable:$true] %s181
          %187 = dma.hbm_to_vmem [thread:$0]  %s3, 18432, %s182, [#allocation4], 128, 128, 8
        $region24: #{encoder_forward.1} parent=11 // pred_fallthru
          _
      $region12: #{encoder_forward.1} parent=5 // pred_fallthru
        _
      %p188 = scmp.lt.s32.totalorder %s13, 2
      // Predicated region
      $region25: #{encoder_forward.1} parent=5 // pred_check
        %p189 = pneg %p188
      $region26: #{encoder_forward.1} parent=5 // pred_check_branch
        %191 = sbr.rel (%p189) target = $region28
      $region27: #{encoder_forward.1} parent=5 // pred_region
        // Predicated region
        $region29: #{encoder_forward.1} parent=27 // pred_check
          %p192 = pneg %p33
        $region30: #{encoder_forward.1} parent=27 // pred_check_branch
          %194 = sbr.rel (%p192) target = $region32
        $region31: #{encoder_forward.1} parent=27 // pred_region
          %p195 = scmp.lt.s32.totalorder %s13, 1
          %s196 = scalar_select %p195, %s13, 1
          %s197 = smul.addr %s196, 3
          %s198 = smul.addr %s197, 4
          %s199 = scalar_lea.vmem %s0, %s198
        $region32: #{encoder_forward.1} parent=27 // pred_fallthru
          _
      $region28: #{encoder_forward.1} parent=5 // pred_fallthru
        _
      %p200 = scmp.le.s32.totalorder 1, %s13
      %p201 = scmp.lt.s32.totalorder %s13, 3
      %p202 = pnand %p200, %p201
      %p203 = pneg %p202
      // Predicated region
      $region33: #{encoder_forward.1} parent=5 // pred_check
        _
      $region34: #{encoder_forward.1} parent=5 // pred_check_branch
        %205 = sbr.rel (%p202) target = $region36
      $region35: #{encoder_forward.1} parent=5 // pred_region
        %s206 = ssub.s32 %s13, 1
        // Predicated region
        $region37: #{encoder_forward.1} parent=35 // pred_check
          %p207 = pneg %p102
        $region38: #{encoder_forward.1} parent=35 // pred_check_branch
          %209 = sbr.rel (%p207) target = $region40
        $region39: #{encoder_forward.1} parent=35 // pred_region
          %210 = dma.done [#allocation4], 18432
        $region40: #{encoder_forward.1} parent=35 // pred_fallthru
          _
        %p211 = scmp.lt.s32.totalorder %s18, 1
        %s212 = scalar_select %p211, %s18, 1
        %s213 = smul.addr %s212, 3
        %s214 = smul.addr %s213, 4
        %s215 = scalar_lea.vmem %s0, %s214
        %p216 = pneg %p39
        %p217 = pneg %p36
        %p218 = pneg %p60
        %p219 = pneg %p57
        %p220 = pneg %p81
        %p221 = pneg %p78
        %p222 = pneg %p102
        %p223 = pneg %p99
        %p224 = pneg %p128
        %p225 = pneg %p125
        %p226 = scmp.lt.s32.totalorder %s18, 1
        %s227 = scalar_select %p226, %s18, 1
        %s228 = smul.addr %s227, 3
        %s229 = smul.addr %s228, 8
        %s230 = scalar_lea.vmem %s4, %s229
        %p231 = pneg %p154
        %p232 = pneg %p151
        %p233 = scmp.lt.s32.totalorder %s18, 1
        %s234 = scalar_select %p233, %s18, 1
        %s235 = smul.addr %s234, 8
        %s236 = scalar_lea.vmem %s5, %s235
        %p237 = scmp.lt.s32.totalorder %s18, 1
        %s238 = scalar_select %p237, %s18, 1
        %s239 = smul.addr %s238, 3
        %s240 = smul.addr %s239, 4
        %s241 = scalar_lea.vmem %s0, %s240
        %p242 = scmp.lt.s32.totalorder %s18, 1
        %s243 = scalar_select %p242, %s18, 1
        %s244 = smul.addr %s243, 3
        %s245 = smul.addr %s244, 8
        %s246 = scalar_lea.vmem %s4, %s245
        %p247 = scmp.lt.s32.totalorder %s18, 1
        %s248 = scalar_select %p247, %s18, 1
        %s249 = smul.addr %s248, 8
        %s250 = scalar_lea.vmem %s5, %s249
        %v251 = vld [vmem:[%s241] sm:$0xff]
        %v252 = vld [vmem:[%s241 + $0x8] sm:$0xf]
        %v254 = vcombine.high %v251, %v251
        %256 = vst [vmem:[#allocation2] sm:$0xf] %v251
        %257 = vst [vmem:[#allocation2 + $0x8] sm:$0xf] %v254
        %vm258 = vcmask 257024
        %259 = vst.msk [vmem:[#allocation2 + $0x10] sm:$0xf] %vm258, %v252
        %v260 = vld [vmem:[%s241] sm:$0xff]
        %v261 = vld [vmem:[%s241 + $0x8] sm:$0xf]
        %v264 = vcombine.low %v260, %v260
        %v265 = vcombine.low %v261, %v261
        %266 = vrot.lane.b32.xlu0 %v264, 127
        %v267 = vpop.permute.xlu0 %266
        %268 = vrot.lane.b32.xlu0 %v260, 127
        %v269 = vpop.permute.xlu0 %268
        %270 = vrot.lane.b32.xlu0 %v265, 127
        %v271 = vpop.permute.xlu0 %270
        %vm272 = vcmask 1039360
        %v273 = vsel %vm272, %v267, %v269
        %v274 = vsel %vm272, %v269, %v271
        %278 = vst [vmem:[#allocation2] sm:$0xf0] %v273
        %279 = vst [vmem:[#allocation2 + $0x8] sm:$0xf0] %v274
        %vm280 = vcmask 261124
        %281 = vst.msk [vmem:[#allocation2 + $0x10] sm:$0xf0] %vm280, %v271
        %v282 = vld [vmem:[%s241] sm:$0xff]
        %v283 = vld [vmem:[%s241 + $0x8] sm:$0xf]
        %v286 = vcombine.high %v282, %v282
        %287 = vrot.lane.b32.xlu0 %v282, 126
        %v288 = vpop.permute.xlu0 %287
        %289 = vrot.lane.b32.xlu0 %v286, 126
        %v290 = vpop.permute.xlu0 %289
        %291 = vrot.lane.b32.xlu0 %v283, 126
        %v292 = vpop.permute.xlu0 %291
        %vm293 = vcmask 1031168
        %v294 = vsel %vm293, %v288, %v290
        %v295 = vsel %vm293, %v290, %v292
        %299 = vst [vmem:[#allocation2 + $0x18] sm:$0xf] %v294
        %300 = vst [vmem:[#allocation2 + $0x20] sm:$0xf] %v295
        %301 = vst.msk [vmem:[#allocation2 + $0x28] sm:$0xf] %vm258, %v292
        %v302 = vld [vmem:[%s241] sm:$0xff]
        %v303 = vld [vmem:[%s241 + $0x8] sm:$0xf]
        %v306 = vcombine.low %v302, %v302
        %v307 = vcombine.low %v303, %v303
        %308 = vrot.lane.b32.xlu0 %v306, 110
        %v309 = vpop.permute.xlu0 %308
        %310 = vrot.lane.b32.xlu0 %v302, 110
        %v311 = vpop.permute.xlu0 %310
        %312 = vrot.lane.b32.xlu0 %v307, 110
        %v313 = vpop.permute.xlu0 %312
        %vm314 = vcmask 900096
        %v315 = vsel %vm314, %v309, %v311
        %v316 = vsel %vm314, %v311, %v313
        %320 = vst [vmem:[#allocation2 + $0x18] sm:$0xf0] %v315
        %321 = vst [vmem:[#allocation2 + $0x20] sm:$0xf0] %v316
        %322 = vst.msk [vmem:[#allocation2 + $0x28] sm:$0xf0] %vm280, %v313
        %v323 = vld [vmem:[%s241] sm:$0xff]
        %v324 = vld [vmem:[%s241 + $0x8] sm:$0xf]
        %v327 = vcombine.high %v323, %v323
        %328 = vrot.lane.b32.xlu0 %v323, 109
        %v329 = vpop.permute.xlu0 %328
        %330 = vrot.lane.b32.xlu0 %v327, 109
        %v331 = vpop.permute.xlu0 %330
        %332 = vrot.lane.b32.xlu0 %v324, 109
        %v333 = vpop.permute.xlu0 %332
        %vm334 = vcmask 891904
        %v335 = vsel %vm334, %v329, %v331
        %v336 = vsel %vm334, %v331, %v333
        %340 = vst [vmem:[#allocation2 + $0x30] sm:$0xf] %v335
        %341 = vst [vmem:[#allocation2 + $0x38] sm:$0xf] %v336
        %342 = vst.msk [vmem:[#allocation2 + $0x40] sm:$0xf] %vm258, %v333
        %v343 = vld [vmem:[%s241] sm:$0xff]
        %v344 = vld [vmem:[%s241 + $0x8] sm:$0xf]
        %v347 = vcombine.low %v343, %v343
        %v348 = vcombine.low %v344, %v344
        %349 = vrot.lane.b32.xlu0 %v347, 108
        %v350 = vpop.permute.xlu0 %349
        %351 = vrot.lane.b32.xlu0 %v343, 108
        %v352 = vpop.permute.xlu0 %351
        %353 = vrot.lane.b32.xlu0 %v348, 108
        %v354 = vpop.permute.xlu0 %353
        %vm355 = vcmask 883712
        %v356 = vsel %vm355, %v350, %v352
        %v357 = vsel %vm355, %v352, %v354
        %361 = vst [vmem:[#allocation2 + $0x30] sm:$0xf0] %v356
        %362 = vst [vmem:[#allocation2 + $0x38] sm:$0xf0] %v357
        %363 = vst.msk [vmem:[#allocation2 + $0x40] sm:$0xf0] %vm280, %v354
        %v364 = vld [vmem:[%s241] sm:$0xff]
        %v365 = vld [vmem:[%s241 + $0x8] sm:$0xf]
        %v368 = vcombine.high %v364, %v364
        %369 = vrot.lane.b32.xlu0 %v364, 92
        %v370 = vpop.permute.xlu0 %369
        %371 = vrot.lane.b32.xlu0 %v368, 92
        %v372 = vpop.permute.xlu0 %371
        %373 = vrot.lane.b32.xlu0 %v365, 92
        %v374 = vpop.permute.xlu0 %373
        %vm375 = vcmask 752640
        %v376 = vsel %vm375, %v370, %v372
        %v377 = vsel %vm375, %v372, %v374
        %381 = vst [vmem:[#allocation2 + $0x48] sm:$0xf] %v376
        %382 = vst [vmem:[#allocation2 + $0x50] sm:$0xf] %v377
        %383 = vst.msk [vmem:[#allocation2 + $0x58] sm:$0xf] %vm258, %v374
        %v384 = vld [vmem:[%s241] sm:$0xff]
        %v385 = vld [vmem:[%s241 + $0x8] sm:$0xf]
        %v388 = vcombine.low %v384, %v384
        %v389 = vcombine.low %v385, %v385
        %390 = vrot.lane.b32.xlu0 %v388, 91
        %v391 = vpop.permute.xlu0 %390
        %392 = vrot.lane.b32.xlu0 %v384, 91
        %v393 = vpop.permute.xlu0 %392
        %394 = vrot.lane.b32.xlu0 %v389, 91
        %v395 = vpop.permute.xlu0 %394
        %vm396 = vcmask 744448
        %v397 = vsel %vm396, %v391, %v393
        %v398 = vsel %vm396, %v393, %v395
        %402 = vst [vmem:[#allocation2 + $0x48] sm:$0xf0] %v397
        %403 = vst [vmem:[#allocation2 + $0x50] sm:$0xf0] %v398
        %404 = vst.msk [vmem:[#allocation2 + $0x58] sm:$0xf0] %vm280, %v395
        %v405 = vld [vmem:[%s241] sm:$0xff]
        %v406 = vld [vmem:[%s241 + $0x8] sm:$0xf]
        %v409 = vcombine.high %v405, %v405
        %410 = vrot.lane.b32.xlu0 %v405, 90
        %v411 = vpop.permute.xlu0 %410
        %412 = vrot.lane.b32.xlu0 %v409, 90
        %v413 = vpop.permute.xlu0 %412
        %414 = vrot.lane.b32.xlu0 %v406, 90
        %v415 = vpop.permute.xlu0 %414
        %vm416 = vcmask 736256
        %v417 = vsel %vm416, %v411, %v413
        %v418 = vsel %vm416, %v413, %v415
        %422 = vst [vmem:[#allocation2 + $0x60] sm:$0xf] %v417
        %423 = vst [vmem:[#allocation2 + $0x68] sm:$0xf] %v418
        %424 = vst.msk [vmem:[#allocation2 + $0x70] sm:$0xf] %vm258, %v415
        %v425 = vld [vmem:[%s1] sm:$0xff]
        %v426 = vld [vmem:[#allocation2] sm:$0xff]
        %v427 = vld [vmem:[#allocation2 + $0x8] sm:$0xff]
        %v428 = vld [vmem:[#allocation2 + $0x10] sm:$0xff]
        %v429 = vld [vmem:[#allocation2 + $0x18] sm:$0xff]
        %v430 = vld [vmem:[#allocation2 + $0x20] sm:$0xff]
        %v431 = vld [vmem:[#allocation2 + $0x28] sm:$0xff]
        %v432 = vld [vmem:[#allocation2 + $0x30] sm:$0xff]
        %v433 = vld [vmem:[#allocation2 + $0x38] sm:$0xff]
        %v434 = vld [vmem:[#allocation2 + $0x40] sm:$0xff]
        %v435 = vld [vmem:[#allocation2 + $0x48] sm:$0xff]
        %v436 = vld [vmem:[#allocation2 + $0x50] sm:$0xff]
        %v437 = vld [vmem:[#allocation2 + $0x58] sm:$0xff]
        %v438 = vld [vmem:[#allocation2 + $0x60] sm:$0xf]
        %v439 = vld [vmem:[#allocation2 + $0x68] sm:$0xf]
        %v440 = vld [vmem:[#allocation2 + $0x70] sm:$0xf]
        %v441 = vld [vmem:[%s2] sm:$0xff]
        %443 = vset.pattern.permute.xlu0 0
        %444 = vperm.xlu0 %443, %v441
        %v445 = vpop.permute.xlu0 %444
        %vm447 = vcmask 293888
        %v449 = vsel %vm447, %v425, 0
        %vm451 = vcmask 1043456
        %v453 = vsel %vm451, %v438, 0
        %v456 = vsel %vm451, %v439, 0
        %v459 = vsel %vm451, %v440, 0
        %461 = vmatprep.subr.mxu0 0.0
        %462 = vmatpush1.msra.mxu0 0.0
        %463 = vmatprep.subr.mxu0 0.0
        %464 = vmatpush1.msra.mxu0 0.0
        %465 = vmatprep.subr.mxu0 0.0
        %466 = vmatpush1.msra.mxu0 0.0
        %467 = vmatprep.subr.mxu0 0.0
        %468 = vmatpush1.msra.mxu0 0.0
        %469 = vmatprep.subr.mxu0 0.0
        %470 = vmatpush1.msra.mxu0 0.0
        %471 = vmatprep.subr.mxu0 0.0
        %472 = vmatpush1.msra.mxu0 0.0
        %473 = vmatprep.subr.mxu0 0.0
        %474 = vmatpush1.msra.mxu0 0.0
        %475 = vmatprep.subr.mxu0 0.0
        %476 = vmatpush1.msra.mxu0 0.0
        %477 = vmatprep.subr.mxu0 0.0
        %478 = vmatpush1.msra.mxu0 0.0
        %479 = vmatprep.subr.mxu0 0.0
        %480 = vmatpush1.msra.mxu0 0.0
        %481 = vmatprep.subr.mxu0 0.0
        %482 = vmatpush1.msra.mxu0 0.0
        %483 = vmatprep.subr.mxu0 %v456
        %484 = vmatpush1.msra.mxu0 %v453
        %485 = vmatprep.subr.mxu0 %v436
        %486 = vmatpush1.msra.mxu0 %v435
        %487 = vmatprep.subr.mxu0 %v433
        %488 = vmatpush1.msra.mxu0 %v432
        %489 = vmatprep.subr.mxu0 %v430
        %490 = vmatpush1.msra.mxu0 %v429
        %491 = vmatprep.subr.mxu0 %v427
        %492 = vmatpush1.msra.mxu0 %v426
        %493 = vmatprep.subr.mxu0 0.0
        %494 = vmatpush2.msra.mxu0 0.0
        %495 = vmatprep.subr.mxu0 0.0
        %496 = vmatpush2.msra.mxu0 0.0
        %497 = vmatprep.subr.mxu0 0.0
        %498 = vmatpush2.msra.mxu0 0.0
        %499 = vmatprep.subr.mxu0 0.0
        %500 = vmatpush2.msra.mxu0 0.0
        %501 = vmatprep.subr.mxu0 0.0
        %502 = vmatpush2.msra.mxu0 0.0
        %503 = vmatprep.subr.mxu0 0.0
        %504 = vmatpush2.msra.mxu0 0.0
        %505 = vmatprep.subr.mxu0 0.0
        %506 = vmatpush2.msra.mxu0 0.0
        %507 = vmatprep.subr.mxu0 0.0
        %508 = vmatpush2.msra.mxu0 0.0
        %509 = vmatprep.subr.mxu0 0.0
        %510 = vmatpush2.msra.mxu0 0.0
        %511 = vmatprep.subr.mxu0 0.0
        %512 = vmatpush2.msra.mxu0 0.0
        %513 = vmatprep.subr.mxu0 0.0
        %514 = vmatpush2.msra.mxu0 0.0
        %515 = vmatprep.subr.mxu0 0.0
        %516 = vmatpush2.msra.mxu0 0.0
        %517 = vmatprep.subr.mxu0 0.0
        %518 = vmatpush2.msra.mxu0 0.0
        %519 = vmatprep.subr.mxu0 0.0
        %520 = vmatpush2.msra.mxu0 0.0
        %521 = vmatprep.subr.mxu0 0.0
        %522 = vmatpush2.msra.mxu0 0.0
        %523 = vmatprep.subr.mxu0 0.0
        %524 = vmatpush2.msra.mxu0 0.0
        %525 = vmatprep.mubr.f32.mxu0 0.0
        %526 = vmatmul.mubr.f32.gmra.mxu0 %v449
        %v527 = vpop.f32.mrf.mxu0
        %v528 = vadd.f32 %v445, %v527
        %v529 = vpop.f32.mrf.mxu0
        %v530 = vadd.f32 %v445, %v529
        %531 = vdwg.mxu0
        %532 = vmatprep.subr.mxu0 0.0
        %533 = vmatpush1.msra.mxu0 0.0
        %534 = vmatprep.subr.mxu0 0.0
        %535 = vmatpush1.msra.mxu0 0.0
        %536 = vmatprep.subr.mxu0 0.0
        %537 = vmatpush1.msra.mxu0 0.0
        %538 = vmatprep.subr.mxu0 0.0
        %539 = vmatpush1.msra.mxu0 0.0
        %540 = vmatprep.subr.mxu0 0.0
        %541 = vmatpush1.msra.mxu0 0.0
        %542 = vmatprep.subr.mxu0 0.0
        %543 = vmatpush1.msra.mxu0 0.0
        %544 = vmatprep.subr.mxu0 0.0
        %545 = vmatpush1.msra.mxu0 0.0
        %546 = vmatprep.subr.mxu0 0.0
        %547 = vmatpush1.msra.mxu0 0.0
        %548 = vmatprep.subr.mxu0 0.0
        %549 = vmatpush1.msra.mxu0 0.0
        %550 = vmatprep.subr.mxu0 0.0
        %551 = vmatpush1.msra.mxu0 0.0
        %552 = vmatprep.subr.mxu0 0.0
        %553 = vmatpush1.msra.mxu0 0.0
        %554 = vmatprep.subr.mxu0 0.0
        %555 = vmatpush1.msra.mxu0 %v459
        %556 = vmatprep.subr.mxu0 0.0
        %557 = vmatpush1.msra.mxu0 %v437
        %558 = vmatprep.subr.mxu0 0.0
        %559 = vmatpush1.msra.mxu0 %v434
        %560 = vmatprep.subr.mxu0 0.0
        %561 = vmatpush1.msra.mxu0 %v431
        %562 = vmatprep.subr.mxu0 0.0
        %563 = vmatpush1.msra.mxu0 %v428
        %564 = vmatprep.subr.mxu0 0.0
        %565 = vmatpush2.msra.mxu0 0.0
        %566 = vmatprep.subr.mxu0 0.0
        %567 = vmatpush2.msra.mxu0 0.0
        %568 = vmatprep.subr.mxu0 0.0
        %569 = vmatpush2.msra.mxu0 0.0
        %570 = vmatprep.subr.mxu0 0.0
        %571 = vmatpush2.msra.mxu0 0.0
        %572 = vmatprep.subr.mxu0 0.0
        %573 = vmatpush2.msra.mxu0 0.0
        %574 = vmatprep.subr.mxu0 0.0
        %575 = vmatpush2.msra.mxu0 0.0
        %576 = vmatprep.subr.mxu0 0.0
        %577 = vmatpush2.msra.mxu0 0.0
        %578 = vmatprep.subr.mxu0 0.0
        %579 = vmatpush2.msra.mxu0 0.0
        %580 = vmatprep.subr.mxu0 0.0
        %581 = vmatpush2.msra.mxu0 0.0
        %582 = vmatprep.subr.mxu0 0.0
        %583 = vmatpush2.msra.mxu0 0.0
        %584 = vmatprep.subr.mxu0 0.0
        %585 = vmatpush2.msra.mxu0 0.0
        %586 = vmatprep.subr.mxu0 0.0
        %587 = vmatpush2.msra.mxu0 0.0
        %588 = vmatprep.subr.mxu0 0.0
        %589 = vmatpush2.msra.mxu0 0.0
        %590 = vmatprep.subr.mxu0 0.0
        %591 = vmatpush2.msra.mxu0 0.0
        %592 = vmatprep.subr.mxu0 0.0
        %593 = vmatpush2.msra.mxu0 0.0
        %594 = vmatprep.subr.mxu0 0.0
        %595 = vmatpush2.msra.mxu0 0.0
        %596 = vmatprep.mubr.f32.mxu0 0.0
        %597 = vmatmul.mubr.f32.gmra.mxu0 %v449
        %v598 = vpop.f32.mrf.mxu0
        %v599 = vadd.f32 %v445, %v598
        %v600 = vpop.f32.mrf.mxu0
        %601 = vdwg.mxu0
        %v602 = vtanh.pop %v528
        %v603 = vtanh.pop %v530
        %v604 = vtanh.pop %v599
        %605 = vst [vmem:[%s246] sm:$0xff] %v602
        %606 = vst [vmem:[%s246 + $0x8] sm:$0xff] %v603
        %vm607 = vcmask 261120
        %608 = vst.msk [vmem:[%s246 + $0x10] sm:$0xff] %vm607, %v604
        %v609 = vld [vmem:[#allocation3] sm:$0xff]
        %v610 = vld [vmem:[#allocation3 + $0x8] sm:$0xff]
        %v611 = vld [vmem:[#allocation3 + $0x10] sm:$0xff]
        %v612 = vld [vmem:[#allocation3 + $0x18] sm:$0xff]
        %v613 = vld [vmem:[#allocation3 + $0x20] sm:$0xff]
        %v614 = vld [vmem:[#allocation3 + $0x28] sm:$0xff]
        %v615 = vld [vmem:[#allocation3 + $0x30] sm:$0xff]
        %v616 = vld [vmem:[#allocation3 + $0x38] sm:$0xff]
        %v617 = vld [vmem:[#allocation3 + $0x40] sm:$0xff]
        %v618 = vld [vmem:[#allocation3 + $0x48] sm:$0xff]
        %v619 = vld [vmem:[#allocation3 + $0x50] sm:$0xff]
        %v620 = vld [vmem:[#allocation3 + $0x58] sm:$0xff]
        %v621 = vld [vmem:[#allocation3 + $0x60] sm:$0xff]
        %v622 = vld [vmem:[#allocation3 + $0x68] sm:$0xff]
        %v623 = vld [vmem:[#allocation3 + $0x70] sm:$0xff]
        %v624 = vld [vmem:[#allocation3 + $0x78] sm:$0xff]
        %v625 = vld [vmem:[#allocation3 + $0x80] sm:$0xff]
        %v626 = vld [vmem:[#allocation3 + $0x88] sm:$0xff]
        %v627 = vld [vmem:[#allocation3 + $0x90] sm:$0xff]
        %v628 = vld [vmem:[#allocation3 + $0x98] sm:$0xff]
        %v629 = vld [vmem:[#allocation3 + $0xa0] sm:$0xff]
        %v630 = vld [vmem:[#allocation3 + $0xa8] sm:$0xff]
        %v631 = vld [vmem:[#allocation3 + $0xb0] sm:$0xff]
        %v632 = vld [vmem:[#allocation3 + $0xb8] sm:$0xff]
        %v633 = vld [vmem:[#allocation3 + $0xc0] sm:$0xff]
        %v634 = vld [vmem:[#allocation3 + $0xc8] sm:$0xff]
        %v635 = vld [vmem:[#allocation3 + $0xd0] sm:$0xff]
        %v636 = vld [vmem:[#allocation3 + $0xd8] sm:$0xff]
        %v637 = vld [vmem:[#allocation3 + $0xe0] sm:$0xff]
        %v638 = vld [vmem:[#allocation3 + $0xe8] sm:$0xff]
        %v639 = vld [vmem:[#allocation3 + $0xf0] sm:$0xff]
        %v640 = vld [vmem:[#allocation3 + $0xf8] sm:$0xff]
        %v641 = vld [vmem:[#allocation3 + $0x100] sm:$0xff]
        %v642 = vld [vmem:[#allocation3 + $0x108] sm:$0xff]
        %v643 = vld [vmem:[#allocation3 + $0x110] sm:$0xff]
        %v644 = vld [vmem:[#allocation3 + $0x118] sm:$0xff]
        %v646 = vsel %vm607, %v604, 0
        %648 = vmatprep.subr.mxu0 0.0
        %649 = vmatpush1.msra.mxu0 %v624
        %650 = vmatprep.subr.mxu0 0.0
        %651 = vmatpush1.msra.mxu0 %v623
        %652 = vmatprep.subr.mxu0 0.0
        %653 = vmatpush1.msra.mxu0 %v622
        %654 = vmatprep.subr.mxu0 0.0
        %655 = vmatpush1.msra.mxu0 %v621
        %656 = vmatprep.subr.mxu0 0.0
        %657 = vmatpush1.msra.mxu0 %v620
        %658 = vmatprep.subr.mxu0 0.0
        %659 = vmatpush1.msra.mxu0 %v619
        %660 = vmatprep.subr.mxu0 0.0
        %661 = vmatpush1.msra.mxu0 %v618
        %662 = vmatprep.subr.mxu0 0.0
        %663 = vmatpush1.msra.mxu0 %v617
        %664 = vmatprep.subr.mxu0 0.0
        %665 = vmatpush1.msra.mxu0 %v616
        %666 = vmatprep.subr.mxu0 0.0
        %667 = vmatpush1.msra.mxu0 %v615
        %668 = vmatprep.subr.mxu0 0.0
        %669 = vmatpush1.msra.mxu0 %v614
        %670 = vmatprep.subr.mxu0 0.0
        %671 = vmatpush1.msra.mxu0 %v613
        %672 = vmatprep.subr.mxu0 0.0
        %673 = vmatpush1.msra.mxu0 %v612
        %674 = vmatprep.subr.mxu0 0.0
        %675 = vmatpush1.msra.mxu0 %v611
        %676 = vmatprep.subr.mxu0 0.0
        %677 = vmatpush1.msra.mxu0 %v610
        %678 = vmatprep.subr.mxu0 0.0
        %679 = vmatpush1.msra.mxu0 %v609
        %680 = vmatprep.subr.mxu0 0.0
        %681 = vmatpush2.msra.mxu0 %v640
        %682 = vmatprep.subr.mxu0 0.0
        %683 = vmatpush2.msra.mxu0 %v639
        %684 = vmatprep.subr.mxu0 0.0
        %685 = vmatpush2.msra.mxu0 %v638
        %686 = vmatprep.subr.mxu0 0.0
        %687 = vmatpush2.msra.mxu0 %v637
        %688 = vmatprep.subr.mxu0 0.0
        %689 = vmatpush2.msra.mxu0 %v636
        %690 = vmatprep.subr.mxu0 0.0
        %691 = vmatpush2.msra.mxu0 %v635
        %692 = vmatprep.subr.mxu0 0.0
        %693 = vmatpush2.msra.mxu0 %v634
        %694 = vmatprep.subr.mxu0 0.0
        %695 = vmatpush2.msra.mxu0 %v633
        %696 = vmatprep.subr.mxu0 0.0
        %697 = vmatpush2.msra.mxu0 %v632
        %698 = vmatprep.subr.mxu0 0.0
        %699 = vmatpush2.msra.mxu0 %v631
        %700 = vmatprep.subr.mxu0 0.0
        %701 = vmatpush2.msra.mxu0 %v630
        %702 = vmatprep.subr.mxu0 0.0
        %703 = vmatpush2.msra.mxu0 %v629
        %704 = vmatprep.subr.mxu0 0.0
        %705 = vmatpush2.msra.mxu0 %v628
        %706 = vmatprep.subr.mxu0 0.0
        %707 = vmatpush2.msra.mxu0 %v627
        %708 = vmatprep.subr.mxu0 0.0
        %709 = vmatpush2.msra.mxu0 %v626
        %710 = vmatprep.subr.mxu0 0.0
        %711 = vmatpush2.msra.mxu0 %v625
        %712 = vmatprep.mubr.f32.mxu0 %v603
        %713 = vmatmul.mubr.f32.gmra.mxu0 %v602
        %v714 = vpop.f32.mrf.mxu0
        %v715 = vadd.f32 0.0, %v714
        %v716 = vpop.f32.mrf.mxu0
        %717 = vdwg.mxu0
        %718 = vmatprep.subr.mxu0 0.0
        %719 = vmatpush1.msra.mxu0 0.0
        %720 = vmatprep.subr.mxu0 0.0
        %721 = vmatpush1.msra.mxu0 0.0
        %722 = vmatprep.subr.mxu0 0.0
        %723 = vmatpush1.msra.mxu0 0.0
        %724 = vmatprep.subr.mxu0 0.0
        %725 = vmatpush1.msra.mxu0 0.0
        %726 = vmatprep.subr.mxu0 0.0
        %727 = vmatpush1.msra.mxu0 0.0
        %728 = vmatprep.subr.mxu0 0.0
        %729 = vmatpush1.msra.mxu0 0.0
        %730 = vmatprep.subr.mxu0 0.0
        %731 = vmatpush1.msra.mxu0 0.0
        %732 = vmatprep.subr.mxu0 0.0
        %733 = vmatpush1.msra.mxu0 0.0
        %734 = vmatprep.subr.mxu0 0.0
        %735 = vmatpush1.msra.mxu0 0.0
        %736 = vmatprep.subr.mxu0 0.0
        %737 = vmatpush1.msra.mxu0 0.0
        %738 = vmatprep.subr.mxu0 0.0
        %739 = vmatpush1.msra.mxu0 0.0
        %740 = vmatprep.subr.mxu0 0.0
        %741 = vmatpush1.msra.mxu0 0.0
        %742 = vmatprep.subr.mxu0 0.0
        %743 = vmatpush1.msra.mxu0 %v644
        %744 = vmatprep.subr.mxu0 0.0
        %745 = vmatpush1.msra.mxu0 %v643
        %746 = vmatprep.subr.mxu0 0.0
        %747 = vmatpush1.msra.mxu0 %v642
        %748 = vmatprep.subr.mxu0 0.0
        %749 = vmatpush1.msra.mxu0 %v641
        %750 = vmatprep.subr.mxu0 0.0
        %751 = vmatpush2.msra.mxu0 0.0
        %752 = vmatprep.subr.mxu0 0.0
        %753 = vmatpush2.msra.mxu0 0.0
        %754 = vmatprep.subr.mxu0 0.0
        %755 = vmatpush2.msra.mxu0 0.0
        %756 = vmatprep.subr.mxu0 0.0
        %757 = vmatpush2.msra.mxu0 0.0
        %758 = vmatprep.subr.mxu0 0.0
        %759 = vmatpush2.msra.mxu0 0.0
        %760 = vmatprep.subr.mxu0 0.0
        %761 = vmatpush2.msra.mxu0 0.0
        %762 = vmatprep.subr.mxu0 0.0
        %763 = vmatpush2.msra.mxu0 0.0
        %764 = vmatprep.subr.mxu0 0.0
        %765 = vmatpush2.msra.mxu0 0.0
        %766 = vmatprep.subr.mxu0 0.0
        %767 = vmatpush2.msra.mxu0 0.0
        %768 = vmatprep.subr.mxu0 0.0
        %769 = vmatpush2.msra.mxu0 0.0
        %770 = vmatprep.subr.mxu0 0.0
        %771 = vmatpush2.msra.mxu0 0.0
        %772 = vmatprep.subr.mxu0 0.0
        %773 = vmatpush2.msra.mxu0 0.0
        %774 = vmatprep.subr.mxu0 0.0
        %775 = vmatpush2.msra.mxu0 0.0
        %776 = vmatprep.subr.mxu0 0.0
        %777 = vmatpush2.msra.mxu0 0.0
        %778 = vmatprep.subr.mxu0 0.0
        %779 = vmatpush2.msra.mxu0 0.0
        %780 = vmatprep.subr.mxu0 0.0
        %781 = vmatpush2.msra.mxu0 0.0
        %782 = vmatprep.mubr.f32.mxu0 0.0
        %783 = vmatmul.mubr.f32.gmra.mxu0 %v646
        %v784 = vpop.f32.mrf.mxu0
        %v785 = vadd.f32 %v715, %v784
        %v786 = vpop.f32.mrf.mxu0
        %787 = vdwg.mxu0
        %s788 = scalar_lea.vmem [#allocation3], 288
        %v789 = vld [vmem:[%s788] sm:$0xff]
        %v790 = vld [vmem:[%s788 + $0x8] sm:$0xff]
        %v791 = vld [vmem:[%s788 + $0x10] sm:$0xff]
        %v792 = vld [vmem:[%s788 + $0x18] sm:$0xff]
        %v793 = vld [vmem:[%s788 + $0x20] sm:$0xff]
        %v794 = vld [vmem:[%s788 + $0x28] sm:$0xff]
        %v795 = vld [vmem:[%s788 + $0x30] sm:$0xff]
        %v796 = vld [vmem:[%s788 + $0x38] sm:$0xff]
        %v797 = vld [vmem:[%s788 + $0x40] sm:$0xff]
        %v798 = vld [vmem:[%s788 + $0x48] sm:$0xff]
        %v799 = vld [vmem:[%s788 + $0x50] sm:$0xff]
        %v800 = vld [vmem:[%s788 + $0x58] sm:$0xff]
        %v801 = vld [vmem:[%s788 + $0x60] sm:$0xff]
        %v802 = vld [vmem:[%s788 + $0x68] sm:$0xff]
        %v803 = vld [vmem:[%s788 + $0x70] sm:$0xff]
        %v804 = vld [vmem:[%s788 + $0x78] sm:$0xff]
        %v805 = vld [vmem:[%s788 + $0x80] sm:$0xff]
        %v806 = vld [vmem:[%s788 + $0x88] sm:$0xff]
        %v807 = vld [vmem:[%s788 + $0x90] sm:$0xff]
        %v808 = vld [vmem:[%s788 + $0x98] sm:$0xff]
        %v809 = vld [vmem:[%s788 + $0xa0] sm:$0xff]
        %v810 = vld [vmem:[%s788 + $0xa8] sm:$0xff]
        %v811 = vld [vmem:[%s788 + $0xb0] sm:$0xff]
        %v812 = vld [vmem:[%s788 + $0xb8] sm:$0xff]
        %v813 = vld [vmem:[%s788 + $0xc0] sm:$0xff]
        %v814 = vld [vmem:[%s788 + $0xc8] sm:$0xff]
        %v815 = vld [vmem:[%s788 + $0xd0] sm:$0xff]
        %v816 = vld [vmem:[%s788 + $0xd8] sm:$0xff]
        %v817 = vld [vmem:[%s788 + $0xe0] sm:$0xff]
        %v818 = vld [vmem:[%s788 + $0xe8] sm:$0xff]
        %v819 = vld [vmem:[%s788 + $0xf0] sm:$0xff]
        %v820 = vld [vmem:[%s788 + $0xf8] sm:$0xff]
        %v821 = vld [vmem:[%s788 + $0x100] sm:$0xff]
        %v822 = vld [vmem:[%s788 + $0x108] sm:$0xff]
        %v823 = vld [vmem:[%s788 + $0x110] sm:$0xff]
        %v824 = vld [vmem:[%s788 + $0x118] sm:$0xff]
        %825 = vmatprep.subr.mxu0 0.0
        %826 = vmatpush1.msra.mxu0 %v804
        %827 = vmatprep.subr.mxu0 0.0
        %828 = vmatpush1.msra.mxu0 %v803
        %829 = vmatprep.subr.mxu0 0.0
        %830 = vmatpush1.msra.mxu0 %v802
        %831 = vmatprep.subr.mxu0 0.0
        %832 = vmatpush1.msra.mxu0 %v801
        %833 = vmatprep.subr.mxu0 0.0
        %834 = vmatpush1.msra.mxu0 %v800
        %835 = vmatprep.subr.mxu0 0.0
        %836 = vmatpush1.msra.mxu0 %v799
        %837 = vmatprep.subr.mxu0 0.0
        %838 = vmatpush1.msra.mxu0 %v798
        %839 = vmatprep.subr.mxu0 0.0
        %840 = vmatpush1.msra.mxu0 %v797
        %841 = vmatprep.subr.mxu0 0.0
        %842 = vmatpush1.msra.mxu0 %v796
        %843 = vmatprep.subr.mxu0 0.0
        %844 = vmatpush1.msra.mxu0 %v795
        %845 = vmatprep.subr.mxu0 0.0
        %846 = vmatpush1.msra.mxu0 %v794
        %847 = vmatprep.subr.mxu0 0.0
        %848 = vmatpush1.msra.mxu0 %v793
        %849 = vmatprep.subr.mxu0 0.0
        %850 = vmatpush1.msra.mxu0 %v792
        %851 = vmatprep.subr.mxu0 0.0
        %852 = vmatpush1.msra.mxu0 %v791
        %853 = vmatprep.subr.mxu0 0.0
        %854 = vmatpush1.msra.mxu0 %v790
        %855 = vmatprep.subr.mxu0 0.0
        %856 = vmatpush1.msra.mxu0 %v789
        %857 = vmatprep.subr.mxu0 0.0
        %858 = vmatpush2.msra.mxu0 %v820
        %859 = vmatprep.subr.mxu0 0.0
        %860 = vmatpush2.msra.mxu0 %v819
        %861 = vmatprep.subr.mxu0 0.0
        %862 = vmatpush2.msra.mxu0 %v818
        %863 = vmatprep.subr.mxu0 0.0
        %864 = vmatpush2.msra.mxu0 %v817
        %865 = vmatprep.subr.mxu0 0.0
        %866 = vmatpush2.msra.mxu0 %v816
        %867 = vmatprep.subr.mxu0 0.0
        %868 = vmatpush2.msra.mxu0 %v815
        %869 = vmatprep.subr.mxu0 0.0
        %870 = vmatpush2.msra.mxu0 %v814
        %871 = vmatprep.subr.mxu0 0.0
        %872 = vmatpush2.msra.mxu0 %v813
        %873 = vmatprep.subr.mxu0 0.0
        %874 = vmatpush2.msra.mxu0 %v812
        %875 = vmatprep.subr.mxu0 0.0
        %876 = vmatpush2.msra.mxu0 %v811
        %877 = vmatprep.subr.mxu0 0.0
        %878 = vmatpush2.msra.mxu0 %v810
        %879 = vmatprep.subr.mxu0 0.0
        %880 = vmatpush2.msra.mxu0 %v809
        %881 = vmatprep.subr.mxu0 0.0
        %882 = vmatpush2.msra.mxu0 %v808
        %883 = vmatprep.subr.mxu0 0.0
        %884 = vmatpush2.msra.mxu0 %v807
        %885 = vmatprep.subr.mxu0 0.0
        %886 = vmatpush2.msra.mxu0 %v806
        %887 = vmatprep.subr.mxu0 0.0
        %888 = vmatpush2.msra.mxu0 %v805
        %889 = vmatprep.mubr.f32.mxu0 %v603
        %890 = vmatmul.mubr.f32.gmra.mxu0 %v602
        %v891 = vpop.f32.mrf.mxu0
        %v892 = vadd.f32 0.0, %v891
        %v893 = vpop.f32.mrf.mxu0
        %894 = vdwg.mxu0
        %895 = vmatprep.subr.mxu0 0.0
        %896 = vmatpush1.msra.mxu0 0.0
        %897 = vmatprep.subr.mxu0 0.0
        %898 = vmatpush1.msra.mxu0 0.0
        %899 = vmatprep.subr.mxu0 0.0
        %900 = vmatpush1.msra.mxu0 0.0
        %901 = vmatprep.subr.mxu0 0.0
        %902 = vmatpush1.msra.mxu0 0.0
        %903 = vmatprep.subr.mxu0 0.0
        %904 = vmatpush1.msra.mxu0 0.0
        %905 = vmatprep.subr.mxu0 0.0
        %906 = vmatpush1.msra.mxu0 0.0
        %907 = vmatprep.subr.mxu0 0.0
        %908 = vmatpush1.msra.mxu0 0.0
        %909 = vmatprep.subr.mxu0 0.0
        %910 = vmatpush1.msra.mxu0 0.0
        %911 = vmatprep.subr.mxu0 0.0
        %912 = vmatpush1.msra.mxu0 0.0
        %913 = vmatprep.subr.mxu0 0.0
        %914 = vmatpush1.msra.mxu0 0.0
        %915 = vmatprep.subr.mxu0 0.0
        %916 = vmatpush1.msra.mxu0 0.0
        %917 = vmatprep.subr.mxu0 0.0
        %918 = vmatpush1.msra.mxu0 0.0
        %919 = vmatprep.subr.mxu0 0.0
        %920 = vmatpush1.msra.mxu0 %v824
        %921 = vmatprep.subr.mxu0 0.0
        %922 = vmatpush1.msra.mxu0 %v823
        %923 = vmatprep.subr.mxu0 0.0
        %924 = vmatpush1.msra.mxu0 %v822
        %925 = vmatprep.subr.mxu0 0.0
        %926 = vmatpush1.msra.mxu0 %v821
        %927 = vmatprep.subr.mxu0 0.0
        %928 = vmatpush2.msra.mxu0 0.0
        %929 = vmatprep.subr.mxu0 0.0
        %930 = vmatpush2.msra.mxu0 0.0
        %931 = vmatprep.subr.mxu0 0.0
        %932 = vmatpush2.msra.mxu0 0.0
        %933 = vmatprep.subr.mxu0 0.0
        %934 = vmatpush2.msra.mxu0 0.0
        %935 = vmatprep.subr.mxu0 0.0
        %936 = vmatpush2.msra.mxu0 0.0
        %937 = vmatprep.subr.mxu0 0.0
        %938 = vmatpush2.msra.mxu0 0.0
        %939 = vmatprep.subr.mxu0 0.0
        %940 = vmatpush2.msra.mxu0 0.0
        %941 = vmatprep.subr.mxu0 0.0
        %942 = vmatpush2.msra.mxu0 0.0
        %943 = vmatprep.subr.mxu0 0.0
        %944 = vmatpush2.msra.mxu0 0.0
        %945 = vmatprep.subr.mxu0 0.0
        %946 = vmatpush2.msra.mxu0 0.0
        %947 = vmatprep.subr.mxu0 0.0
        %948 = vmatpush2.msra.mxu0 0.0
        %949 = vmatprep.subr.mxu0 0.0
        %950 = vmatpush2.msra.mxu0 0.0
        %951 = vmatprep.subr.mxu0 0.0
        %952 = vmatpush2.msra.mxu0 0.0
        %953 = vmatprep.subr.mxu0 0.0
        %954 = vmatpush2.msra.mxu0 0.0
        %955 = vmatprep.subr.mxu0 0.0
        %956 = vmatpush2.msra.mxu0 0.0
        %957 = vmatprep.subr.mxu0 0.0
        %958 = vmatpush2.msra.mxu0 0.0
        %959 = vmatprep.mubr.f32.mxu0 0.0
        %960 = vmatmul.mubr.f32.gmra.mxu0 %v646
        %v961 = vpop.f32.mrf.mxu0
        %v962 = vadd.f32 %v892, %v961
        %v963 = vpop.f32.mrf.mxu0
        %964 = vdwg.mxu0
        %s965 = scalar_lea.vmem [#allocation3], 576
        %v966 = vld [vmem:[%s965] sm:$0xff]
        %v967 = vld [vmem:[%s965 + $0x8] sm:$0xff]
        %v968 = vld [vmem:[%s965 + $0x10] sm:$0xff]
        %v969 = vld [vmem:[%s965 + $0x18] sm:$0xff]
        %v970 = vld [vmem:[%s965 + $0x20] sm:$0xff]
        %v971 = vld [vmem:[%s965 + $0x28] sm:$0xff]
        %v972 = vld [vmem:[%s965 + $0x30] sm:$0xff]
        %v973 = vld [vmem:[%s965 + $0x38] sm:$0xff]
        %v974 = vld [vmem:[%s965 + $0x40] sm:$0xff]
        %v975 = vld [vmem:[%s965 + $0x48] sm:$0xff]
        %v976 = vld [vmem:[%s965 + $0x50] sm:$0xff]
        %v977 = vld [vmem:[%s965 + $0x58] sm:$0xff]
        %v978 = vld [vmem:[%s965 + $0x60] sm:$0xff]
        %v979 = vld [vmem:[%s965 + $0x68] sm:$0xff]
        %v980 = vld [vmem:[%s965 + $0x70] sm:$0xff]
        %v981 = vld [vmem:[%s965 + $0x78] sm:$0xff]
        %v982 = vld [vmem:[%s965 + $0x80] sm:$0xff]
        %v983 = vld [vmem:[%s965 + $0x88] sm:$0xff]
        %v984 = vld [vmem:[%s965 + $0x90] sm:$0xff]
        %v985 = vld [vmem:[%s965 + $0x98] sm:$0xff]
        %v986 = vld [vmem:[%s965 + $0xa0] sm:$0xff]
        %v987 = vld [vmem:[%s965 + $0xa8] sm:$0xff]
        %v988 = vld [vmem:[%s965 + $0xb0] sm:$0xff]
        %v989 = vld [vmem:[%s965 + $0xb8] sm:$0xff]
        %v990 = vld [vmem:[%s965 + $0xc0] sm:$0xff]
        %v991 = vld [vmem:[%s965 + $0xc8] sm:$0xff]
        %v992 = vld [vmem:[%s965 + $0xd0] sm:$0xff]
        %v993 = vld [vmem:[%s965 + $0xd8] sm:$0xff]
        %v994 = vld [vmem:[%s965 + $0xe0] sm:$0xff]
        %v995 = vld [vmem:[%s965 + $0xe8] sm:$0xff]
        %v996 = vld [vmem:[%s965 + $0xf0] sm:$0xff]
        %v997 = vld [vmem:[%s965 + $0xf8] sm:$0xff]
        %v998 = vld [vmem:[%s965 + $0x100] sm:$0xff]
        %v999 = vld [vmem:[%s965 + $0x108] sm:$0xff]
        %v1000 = vld [vmem:[%s965 + $0x110] sm:$0xff]
        %v1001 = vld [vmem:[%s965 + $0x118] sm:$0xff]
        %1002 = vmatprep.subr.mxu0 0.0
        %1003 = vmatpush1.msra.mxu0 %v981
        %1004 = vmatprep.subr.mxu0 0.0
        %1005 = vmatpush1.msra.mxu0 %v980
        %1006 = vmatprep.subr.mxu0 0.0
        %1007 = vmatpush1.msra.mxu0 %v979
        %1008 = vmatprep.subr.mxu0 0.0
        %1009 = vmatpush1.msra.mxu0 %v978
        %1010 = vmatprep.subr.mxu0 0.0
        %1011 = vmatpush1.msra.mxu0 %v977
        %1012 = vmatprep.subr.mxu0 0.0
        %1013 = vmatpush1.msra.mxu0 %v976
        %1014 = vmatprep.subr.mxu0 0.0
        %1015 = vmatpush1.msra.mxu0 %v975
        %1016 = vmatprep.subr.mxu0 0.0
        %1017 = vmatpush1.msra.mxu0 %v974
        %1018 = vmatprep.subr.mxu0 0.0
        %1019 = vmatpush1.msra.mxu0 %v973
        %1020 = vmatprep.subr.mxu0 0.0
        %1021 = vmatpush1.msra.mxu0 %v972
        %1022 = vmatprep.subr.mxu0 0.0
        %1023 = vmatpush1.msra.mxu0 %v971
        %1024 = vmatprep.subr.mxu0 0.0
        %1025 = vmatpush1.msra.mxu0 %v970
        %1026 = vmatprep.subr.mxu0 0.0
        %1027 = vmatpush1.msra.mxu0 %v969
        %1028 = vmatprep.subr.mxu0 0.0
        %1029 = vmatpush1.msra.mxu0 %v968
        %1030 = vmatprep.subr.mxu0 0.0
        %1031 = vmatpush1.msra.mxu0 %v967
        %1032 = vmatprep.subr.mxu0 0.0
        %1033 = vmatpush1.msra.mxu0 %v966
        %1034 = vmatprep.subr.mxu0 0.0
        %1035 = vmatpush2.msra.mxu0 %v997
        %1036 = vmatprep.subr.mxu0 0.0
        %1037 = vmatpush2.msra.mxu0 %v996
        %1038 = vmatprep.subr.mxu0 0.0
        %1039 = vmatpush2.msra.mxu0 %v995
        %1040 = vmatprep.subr.mxu0 0.0
        %1041 = vmatpush2.msra.mxu0 %v994
        %1042 = vmatprep.subr.mxu0 0.0
        %1043 = vmatpush2.msra.mxu0 %v993
        %1044 = vmatprep.subr.mxu0 0.0
        %1045 = vmatpush2.msra.mxu0 %v992
        %1046 = vmatprep.subr.mxu0 0.0
        %1047 = vmatpush2.msra.mxu0 %v991
        %1048 = vmatprep.subr.mxu0 0.0
        %1049 = vmatpush2.msra.mxu0 %v990
        %1050 = vmatprep.subr.mxu0 0.0
        %1051 = vmatpush2.msra.mxu0 %v989
        %1052 = vmatprep.subr.mxu0 0.0
        %1053 = vmatpush2.msra.mxu0 %v988
        %1054 = vmatprep.subr.mxu0 0.0
        %1055 = vmatpush2.msra.mxu0 %v987
        %1056 = vmatprep.subr.mxu0 0.0
        %1057 = vmatpush2.msra.mxu0 %v986
        %1058 = vmatprep.subr.mxu0 0.0
        %1059 = vmatpush2.msra.mxu0 %v985
        %1060 = vmatprep.subr.mxu0 0.0
        %1061 = vmatpush2.msra.mxu0 %v984
        %1062 = vmatprep.subr.mxu0 0.0
        %1063 = vmatpush2.msra.mxu0 %v983
        %1064 = vmatprep.subr.mxu0 0.0
        %1065 = vmatpush2.msra.mxu0 %v982
        %1066 = vmatprep.mubr.f32.mxu0 %v603
        %1067 = vmatmul.mubr.f32.gmra.mxu0 %v602
        %v1068 = vpop.f32.mrf.mxu0
        %v1069 = vadd.f32 0.0, %v1068
        %v1070 = vpop.f32.mrf.mxu0
        %1071 = vdwg.mxu0
        %1072 = vmatprep.subr.mxu0 0.0
        %1073 = vmatpush1.msra.mxu0 0.0
        %1074 = vmatprep.subr.mxu0 0.0
        %1075 = vmatpush1.msra.mxu0 0.0
        %1076 = vmatprep.subr.mxu0 0.0
        %1077 = vmatpush1.msra.mxu0 0.0
        %1078 = vmatprep.subr.mxu0 0.0
        %1079 = vmatpush1.msra.mxu0 0.0
        %1080 = vmatprep.subr.mxu0 0.0
        %1081 = vmatpush1.msra.mxu0 0.0
        %1082 = vmatprep.subr.mxu0 0.0
        %1083 = vmatpush1.msra.mxu0 0.0
        %1084 = vmatprep.subr.mxu0 0.0
        %1085 = vmatpush1.msra.mxu0 0.0
        %1086 = vmatprep.subr.mxu0 0.0
        %1087 = vmatpush1.msra.mxu0 0.0
        %1088 = vmatprep.subr.mxu0 0.0
        %1089 = vmatpush1.msra.mxu0 0.0
        %1090 = vmatprep.subr.mxu0 0.0
        %1091 = vmatpush1.msra.mxu0 0.0
        %1092 = vmatprep.subr.mxu0 0.0
        %1093 = vmatpush1.msra.mxu0 0.0
        %1094 = vmatprep.subr.mxu0 0.0
        %1095 = vmatpush1.msra.mxu0 0.0
        %1096 = vmatprep.subr.mxu0 0.0
        %1097 = vmatpush1.msra.mxu0 %v1001
        %1098 = vmatprep.subr.mxu0 0.0
        %1099 = vmatpush1.msra.mxu0 %v1000
        %1100 = vmatprep.subr.mxu0 0.0
        %1101 = vmatpush1.msra.mxu0 %v999
        %1102 = vmatprep.subr.mxu0 0.0
        %1103 = vmatpush1.msra.mxu0 %v998
        %1104 = vmatprep.subr.mxu0 0.0
        %1105 = vmatpush2.msra.mxu0 0.0
        %1106 = vmatprep.subr.mxu0 0.0
        %1107 = vmatpush2.msra.mxu0 0.0
        %1108 = vmatprep.subr.mxu0 0.0
        %1109 = vmatpush2.msra.mxu0 0.0
        %1110 = vmatprep.subr.mxu0 0.0
        %1111 = vmatpush2.msra.mxu0 0.0
        %1112 = vmatprep.subr.mxu0 0.0
        %1113 = vmatpush2.msra.mxu0 0.0
        %1114 = vmatprep.subr.mxu0 0.0
        %1115 = vmatpush2.msra.mxu0 0.0
        %1116 = vmatprep.subr.mxu0 0.0
        %1117 = vmatpush2.msra.mxu0 0.0
        %1118 = vmatprep.subr.mxu0 0.0
        %1119 = vmatpush2.msra.mxu0 0.0
        %1120 = vmatprep.subr.mxu0 0.0
        %1121 = vmatpush2.msra.mxu0 0.0
        %1122 = vmatprep.subr.mxu0 0.0
        %1123 = vmatpush2.msra.mxu0 0.0
        %1124 = vmatprep.subr.mxu0 0.0
        %1125 = vmatpush2.msra.mxu0 0.0
        %1126 = vmatprep.subr.mxu0 0.0
        %1127 = vmatpush2.msra.mxu0 0.0
        %1128 = vmatprep.subr.mxu0 0.0
        %1129 = vmatpush2.msra.mxu0 0.0
        %1130 = vmatprep.subr.mxu0 0.0
        %1131 = vmatpush2.msra.mxu0 0.0
        %1132 = vmatprep.subr.mxu0 0.0
        %1133 = vmatpush2.msra.mxu0 0.0
        %1134 = vmatprep.subr.mxu0 0.0
        %1135 = vmatpush2.msra.mxu0 0.0
        %1136 = vmatprep.mubr.f32.mxu0 0.0
        %1137 = vmatmul.mubr.f32.gmra.mxu0 %v646
        %v1138 = vpop.f32.mrf.mxu0
        %v1139 = vadd.f32 %v1069, %v1138
        %v1140 = vpop.f32.mrf.mxu0
        %1141 = vdwg.mxu0
        %s1142 = scalar_lea.vmem [#allocation3], 864
        %v1143 = vld [vmem:[%s1142] sm:$0xff]
        %v1144 = vld [vmem:[%s1142 + $0x8] sm:$0xff]
        %v1145 = vld [vmem:[%s1142 + $0x10] sm:$0xff]
        %v1146 = vld [vmem:[%s1142 + $0x18] sm:$0xff]
        %v1147 = vld [vmem:[%s1142 + $0x20] sm:$0xff]
        %v1148 = vld [vmem:[%s1142 + $0x28] sm:$0xff]
        %v1149 = vld [vmem:[%s1142 + $0x30] sm:$0xff]
        %v1150 = vld [vmem:[%s1142 + $0x38] sm:$0xff]
        %v1151 = vld [vmem:[%s1142 + $0x40] sm:$0xff]
        %v1152 = vld [vmem:[%s1142 + $0x48] sm:$0xff]
        %v1153 = vld [vmem:[%s1142 + $0x50] sm:$0xff]
        %v1154 = vld [vmem:[%s1142 + $0x58] sm:$0xff]
        %v1155 = vld [vmem:[%s1142 + $0x60] sm:$0xff]
        %v1156 = vld [vmem:[%s1142 + $0x68] sm:$0xff]
        %v1157 = vld [vmem:[%s1142 + $0x70] sm:$0xff]
        %v1158 = vld [vmem:[%s1142 + $0x78] sm:$0xff]
        %v1159 = vld [vmem:[%s1142 + $0x80] sm:$0xff]
        %v1160 = vld [vmem:[%s1142 + $0x88] sm:$0xff]
        %v1161 = vld [vmem:[%s1142 + $0x90] sm:$0xff]
        %v1162 = vld [vmem:[%s1142 + $0x98] sm:$0xff]
        %v1163 = vld [vmem:[%s1142 + $0xa0] sm:$0xff]
        %v1164 = vld [vmem:[%s1142 + $0xa8] sm:$0xff]
        %v1165 = vld [vmem:[%s1142 + $0xb0] sm:$0xff]
        %v1166 = vld [vmem:[%s1142 + $0xb8] sm:$0xff]
        %v1167 = vld [vmem:[%s1142 + $0xc0] sm:$0xff]
        %v1168 = vld [vmem:[%s1142 + $0xc8] sm:$0xff]
        %v1169 = vld [vmem:[%s1142 + $0xd0] sm:$0xff]
        %v1170 = vld [vmem:[%s1142 + $0xd8] sm:$0xff]
        %v1171 = vld [vmem:[%s1142 + $0xe0] sm:$0xff]
        %v1172 = vld [vmem:[%s1142 + $0xe8] sm:$0xff]
        %v1173 = vld [vmem:[%s1142 + $0xf0] sm:$0xff]
        %v1174 = vld [vmem:[%s1142 + $0xf8] sm:$0xff]
        %v1175 = vld [vmem:[%s1142 + $0x100] sm:$0xff]
        %v1176 = vld [vmem:[%s1142 + $0x108] sm:$0xff]
        %v1177 = vld [vmem:[%s1142 + $0x110] sm:$0xff]
        %v1178 = vld [vmem:[%s1142 + $0x118] sm:$0xff]
        %1179 = vmatprep.subr.mxu0 0.0
        %1180 = vmatpush1.msra.mxu0 %v1158
        %1181 = vmatprep.subr.mxu0 0.0
        %1182 = vmatpush1.msra.mxu0 %v1157
        %1183 = vmatprep.subr.mxu0 0.0
        %1184 = vmatpush1.msra.mxu0 %v1156
        %1185 = vmatprep.subr.mxu0 0.0
        %1186 = vmatpush1.msra.mxu0 %v1155
        %1187 = vmatprep.subr.mxu0 0.0
        %1188 = vmatpush1.msra.mxu0 %v1154
        %1189 = vmatprep.subr.mxu0 0.0
        %1190 = vmatpush1.msra.mxu0 %v1153
        %1191 = vmatprep.subr.mxu0 0.0
        %1192 = vmatpush1.msra.mxu0 %v1152
        %1193 = vmatprep.subr.mxu0 0.0
        %1194 = vmatpush1.msra.mxu0 %v1151
        %1195 = vmatprep.subr.mxu0 0.0
        %1196 = vmatpush1.msra.mxu0 %v1150
        %1197 = vmatprep.subr.mxu0 0.0
        %1198 = vmatpush1.msra.mxu0 %v1149
        %1199 = vmatprep.subr.mxu0 0.0
        %1200 = vmatpush1.msra.mxu0 %v1148
        %1201 = vmatprep.subr.mxu0 0.0
        %1202 = vmatpush1.msra.mxu0 %v1147
        %1203 = vmatprep.subr.mxu0 0.0
        %1204 = vmatpush1.msra.mxu0 %v1146
        %1205 = vmatprep.subr.mxu0 0.0
        %1206 = vmatpush1.msra.mxu0 %v1145
        %1207 = vmatprep.subr.mxu0 0.0
        %1208 = vmatpush1.msra.mxu0 %v1144
        %1209 = vmatprep.subr.mxu0 0.0
        %1210 = vmatpush1.msra.mxu0 %v1143
        %1211 = vmatprep.subr.mxu0 0.0
        %1212 = vmatpush2.msra.mxu0 %v1174
        %1213 = vmatprep.subr.mxu0 0.0
        %1214 = vmatpush2.msra.mxu0 %v1173
        %1215 = vmatprep.subr.mxu0 0.0
        %1216 = vmatpush2.msra.mxu0 %v1172
        %1217 = vmatprep.subr.mxu0 0.0
        %1218 = vmatpush2.msra.mxu0 %v1171
        %1219 = vmatprep.subr.mxu0 0.0
        %1220 = vmatpush2.msra.mxu0 %v1170
        %1221 = vmatprep.subr.mxu0 0.0
        %1222 = vmatpush2.msra.mxu0 %v1169
        %1223 = vmatprep.subr.mxu0 0.0
        %1224 = vmatpush2.msra.mxu0 %v1168
        %1225 = vmatprep.subr.mxu0 0.0
        %1226 = vmatpush2.msra.mxu0 %v1167
        %1227 = vmatprep.subr.mxu0 0.0
        %1228 = vmatpush2.msra.mxu0 %v1166
        %1229 = vmatprep.subr.mxu0 0.0
        %1230 = vmatpush2.msra.mxu0 %v1165
        %1231 = vmatprep.subr.mxu0 0.0
        %1232 = vmatpush2.msra.mxu0 %v1164
        %1233 = vmatprep.subr.mxu0 0.0
        %1234 = vmatpush2.msra.mxu0 %v1163
        %1235 = vmatprep.subr.mxu0 0.0
        %1236 = vmatpush2.msra.mxu0 %v1162
        %1237 = vmatprep.subr.mxu0 0.0
        %1238 = vmatpush2.msra.mxu0 %v1161
        %1239 = vmatprep.subr.mxu0 0.0
        %1240 = vmatpush2.msra.mxu0 %v1160
        %1241 = vmatprep.subr.mxu0 0.0
        %1242 = vmatpush2.msra.mxu0 %v1159
        %1243 = vmatprep.mubr.f32.mxu0 %v603
        %1244 = vmatmul.mubr.f32.gmra.mxu0 %v602
        %v1245 = vpop.f32.mrf.mxu0
        %v1246 = vadd.f32 0.0, %v1245
        %v1247 = vpop.f32.mrf.mxu0
        %1248 = vdwg.mxu0
        %1249 = vmatprep.subr.mxu0 0.0
        %1250 = vmatpush1.msra.mxu0 0.0
        %1251 = vmatprep.subr.mxu0 0.0
        %1252 = vmatpush1.msra.mxu0 0.0
        %1253 = vmatprep.subr.mxu0 0.0
        %1254 = vmatpush1.msra.mxu0 0.0
        %1255 = vmatprep.subr.mxu0 0.0
        %1256 = vmatpush1.msra.mxu0 0.0
        %1257 = vmatprep.subr.mxu0 0.0
        %1258 = vmatpush1.msra.mxu0 0.0
        %1259 = vmatprep.subr.mxu0 0.0
        %1260 = vmatpush1.msra.mxu0 0.0
        %1261 = vmatprep.subr.mxu0 0.0
        %1262 = vmatpush1.msra.mxu0 0.0
        %1263 = vmatprep.subr.mxu0 0.0
        %1264 = vmatpush1.msra.mxu0 0.0
        %1265 = vmatprep.subr.mxu0 0.0
        %1266 = vmatpush1.msra.mxu0 0.0
        %1267 = vmatprep.subr.mxu0 0.0
        %1268 = vmatpush1.msra.mxu0 0.0
        %1269 = vmatprep.subr.mxu0 0.0
        %1270 = vmatpush1.msra.mxu0 0.0
        %1271 = vmatprep.subr.mxu0 0.0
        %1272 = vmatpush1.msra.mxu0 0.0
        %1273 = vmatprep.subr.mxu0 0.0
        %1274 = vmatpush1.msra.mxu0 %v1178
        %1275 = vmatprep.subr.mxu0 0.0
        %1276 = vmatpush1.msra.mxu0 %v1177
        %1277 = vmatprep.subr.mxu0 0.0
        %1278 = vmatpush1.msra.mxu0 %v1176
        %1279 = vmatprep.subr.mxu0 0.0
        %1280 = vmatpush1.msra.mxu0 %v1175
        %1281 = vmatprep.subr.mxu0 0.0
        %1282 = vmatpush2.msra.mxu0 0.0
        %1283 = vmatprep.subr.mxu0 0.0
        %1284 = vmatpush2.msra.mxu0 0.0
        %1285 = vmatprep.subr.mxu0 0.0
        %1286 = vmatpush2.msra.mxu0 0.0
        %1287 = vmatprep.subr.mxu0 0.0
        %1288 = vmatpush2.msra.mxu0 0.0
        %1289 = vmatprep.subr.mxu0 0.0
        %1290 = vmatpush2.msra.mxu0 0.0
        %1291 = vmatprep.subr.mxu0 0.0
        %1292 = vmatpush2.msra.mxu0 0.0
        %1293 = vmatprep.subr.mxu0 0.0
        %1294 = vmatpush2.msra.mxu0 0.0
        %1295 = vmatprep.subr.mxu0 0.0
        %1296 = vmatpush2.msra.mxu0 0.0
        %1297 = vmatprep.subr.mxu0 0.0
        %1298 = vmatpush2.msra.mxu0 0.0
        %1299 = vmatprep.subr.mxu0 0.0
        %1300 = vmatpush2.msra.mxu0 0.0
        %1301 = vmatprep.subr.mxu0 0.0
        %1302 = vmatpush2.msra.mxu0 0.0
        %1303 = vmatprep.subr.mxu0 0.0
        %1304 = vmatpush2.msra.mxu0 0.0
        %1305 = vmatprep.subr.mxu0 0.0
        %1306 = vmatpush2.msra.mxu0 0.0
        %1307 = vmatprep.subr.mxu0 0.0
        %1308 = vmatpush2.msra.mxu0 0.0
        %1309 = vmatprep.subr.mxu0 0.0
        %1310 = vmatpush2.msra.mxu0 0.0
        %1311 = vmatprep.subr.mxu0 0.0
        %1312 = vmatpush2.msra.mxu0 0.0
        %1313 = vmatprep.mubr.f32.mxu0 0.0
        %1314 = vmatmul.mubr.f32.gmra.mxu0 %v646
        %v1315 = vpop.f32.mrf.mxu0
        %v1316 = vadd.f32 %v1246, %v1315
        %v1317 = vpop.f32.mrf.mxu0
        %1318 = vdwg.mxu0
        %v1319 = vmax.f32 %v785, %v962
        %v1320 = vmax.f32 %v1139, %v1316
        %v1321 = vmax.f32 %v1319, %v1320
        %vm1322 = vcmask 523264
        %1323 = vst.msk [vmem:[%s250] sm:$0xff] %vm1322, %v1321
        %p1324 = scmp.lt.s32.totalorder %s18, 1
        %s1325 = scalar_select %p1324, %s18, 1
        %s1326 = smul.addr %s1325, 3
        %s1327 = smul.addr %s1326, 8
        %s1328 = scalar_lea.vmem %s4, %s1327
        %p1329 = scmp.lt.s32.totalorder %s18, 1
        %s1330 = scalar_select %p1329, %s18, 1
        %s1331 = smul.addr %s1330, 8
        %s1332 = scalar_lea.vmem %s5, %s1331
        // Predicated region
        $region41: #{encoder_forward.1} parent=35 // pred_check
          %p1333 = pneg %p125
        $region42: #{encoder_forward.1} parent=35 // pred_check_branch
          %1335 = sbr.rel (%p1333) target = $region44
        $region43: #{encoder_forward.1} parent=35 // pred_region
          _
        $region44: #{encoder_forward.1} parent=35 // pred_fallthru
          _
        // Predicated region
        $region45: #{encoder_forward.1} parent=35 // pred_check
          %p1336 = pneg %p151
        $region46: #{encoder_forward.1} parent=35 // pred_check_branch
          %1338 = sbr.rel (%p1336) target = $region48
        $region47: #{encoder_forward.1} parent=35 // pred_region
          _
        $region48: #{encoder_forward.1} parent=35 // pred_fallthru
          _
      $region36: #{encoder_forward.1} parent=5 // pred_fallthru
        _
      %p1339 = scmp.le.s32.totalorder 2, %s13
      // Predicated region
      $region49: #{encoder_forward.1} parent=5 // pred_check
        %p1340 = pneg %p1339
      $region50: #{encoder_forward.1} parent=5 // pred_check_branch
        %1342 = sbr.rel (%p1340) target = $region52
      $region51: #{encoder_forward.1} parent=5 // pred_region
        %s1343 = ssub.s32 %s13, 2
        // Predicated region
        $region53: #{encoder_forward.1} parent=51 // pred_check
          %p1344 = pneg %p131
        $region54: #{encoder_forward.1} parent=51 // pred_check_branch
          %1346 = sbr.rel (%p1344) target = $region56
        $region55: #{encoder_forward.1} parent=51 // pred_region
          %p1347 = scmp.lt.s32.totalorder %s19, 1
          %s1348 = scalar_select %p1347, %s19, 1
          %s1349 = smul.addr %s1348, 3
          %s1350 = smul.addr %s1349, 8
          %s1351 = scalar_lea.vmem %s4, %s1350
        $region56: #{encoder_forward.1} parent=51 // pred_fallthru
          _
        // Predicated region
        $region57: #{encoder_forward.1} parent=51 // pred_check
          %p1352 = pneg %p157
        $region58: #{encoder_forward.1} parent=51 // pred_check_branch
          %1354 = sbr.rel (%p1352) target = $region60
        $region59: #{encoder_forward.1} parent=51 // pred_region
          %p1355 = scmp.lt.s32.totalorder %s19, 1
          %s1356 = scalar_select %p1355, %s19, 1
          %s1357 = smul.addr %s1356, 8
          %s1358 = scalar_lea.vmem %s5, %s1357
        $region60: #{encoder_forward.1} parent=51 // pred_fallthru
          _
      $region52: #{encoder_forward.1} parent=5 // pred_fallthru
        _
    $region6: #{encoder_forward.1} parent=1 // loop_footer
      %s17 = sadd.s32 1, %s13
    $region7: #{encoder_forward.1} parent=1 // loop_footer_branch
      %12 = sbr.rel target = $region3
    $region8: #{encoder_forward.1} parent=1 // loop_exit
      _
    %1359 = vsyncpa [#allocation4], 1
    %s1360 = scalar_lea.sflag [#allocation4], 1
    %1361 = vsyncpa %s1360, 1

</llo_original>
